<compile_context>
chip_gen: v7x
topology: tpu7x:2x2x1
jax: 0.10.0
libtpu: 0.0.40
codegen_flags: <defaults>
</compile_context>

<pallas_src>
import jax
import jax.numpy as jnp
from jax import lax
from jax.experimental import pallas as pl
from jax.experimental.pallas import tpu as pltpu

# ----------------------------- module hyper-params -----------------------------
ACTION_SPACE = 4
FRAME_STACK = 4
ROLLOUT_STEPS = 5
LSTM_CELLS = 64          # number_lstm_cells (kept small for the example)
POOL = 4                 # spatial pooling inside imagination_core.encode
LATENT_C = 16            # latent-space channels
ENC_C = 8                # EncoderCNN output channels


# ------------------------------- fused Pallas kernel ---------------------------
def _fused_rollout_kernel(x0_ref, abias_ref,
                          wenc_ref, benc_ref,
                          wdyn_ref, rrow_ref,
                          wcnn_ref, bcnn_ref,
                          wx_ref, wxr_ref, wh_ref, blstm_ref,
                          hout_ref):
    f32, bf16 = jnp.float32, jnp.bfloat16
    n = x0_ref.shape[0]
    hid = hout_ref.shape[1]

    # imagination_core.encode: pooled obs -> latent (1x1 conv + relu), already
    # tiled to one row per (action, batch) rollout.
    cur0 = jnp.maximum(
        jnp.dot(x0_ref[...].astype(bf16), wenc_ref[...],
                preferred_element_type=f32) + benc_ref[...], 0.0)

    h0 = jnp.zeros((n, hid), f32)
    c0 = jnp.zeros((n, hid), f32)

    abias = abias_ref[...]      # (N, S*LC)  action part of the dynamics conv + bias
    rrow = rrow_ref[...]        # (1, S*LC)  spatial-mean weight * reward weight, fused
    bcnn = bcnn_ref[...]        # (1, S*ENC_C)
    wxr = wxr_ref[...]          # (1, 4H)    reward row of the LSTM input weight
    blstm = blstm_ref[...]      # (1, 4H)    LSTM bias (+ reward-bias term folded in)

    def step(_, carry):
        cur, h, c = carry
        # dynamics 1x1 conv (latent part; action part folded into abias) + relu
        nxt = jnp.maximum(
            jnp.dot(cur.astype(bf16), wdyn_ref[...],
                    preferred_element_type=f32) + abias, 0.0)
        # reward head on the spatially averaged latent: VPU mul + XLU lane reduce
        reward = jnp.sum(nxt * rrow, axis=-1, keepdims=True)            # (N, 1)
        # EncoderCNN 1x1 conv + relu, produced directly as a lane-dense
        # (N, S*ENC_C) = (8, 128) slab (no reshape, no narrow stores).
        feat = jnp.maximum(
            jnp.dot(nxt.astype(bf16), wcnn_ref[...],
                    preferred_element_type=f32) + bcnn, 0.0)
        # fused LSTM cell; reward enters the gates as a rank-1 update so the
        # gate matmul keeps a clean K = 128 (no (·, 129) padding / concat).
        gates = (jnp.dot(feat.astype(bf16), wx_ref[...], preferred_element_type=f32)
                 + jnp.dot(h.astype(bf16), wh_ref[...], preferred_element_type=f32)
                 + reward * wxr + blstm)
        i = jax.nn.sigmoid(gates[:, 0 * hid:1 * hid])
        f = jax.nn.sigmoid(gates[:, 1 * hid:2 * hid])
        g = jnp.tanh(gates[:, 2 * hid:3 * hid])
        o = jax.nn.sigmoid(gates[:, 3 * hid:4 * hid])
        c_new = f * c + i * g
        h_new = o * jnp.tanh(c_new)
        return nxt, h_new, c_new

    _, h_fin, _ = lax.fori_loop(0, ROLLOUT_STEPS, step, (cur0, h0, c0),
                                unroll=True)
    hout_ref[...] = h_fin


def fused_rollout(x0, abias, packed):
    """One pallas_call for encode + full imagined rollout + LSTM. Returns (N, LSTM_CELLS)."""
    n = x0.shape[0]
    ins = (x0, abias,
           packed["w_enc"], packed["b_enc"],
           packed["w_dyn"], packed["r_row"],
           packed["w_cnn"], packed["b_cnn"],
           packed["wx"], packed["wxr"], packed["wh"], packed["b_lstm"])

    def full_spec(arr):
        assert arr.ndim == 2
        return pl.BlockSpec(arr.shape, lambda i: (0, 0))

    return pl.pallas_call(
        _fused_rollout_kernel,
        out_shape=jax.ShapeDtypeStruct((n, LSTM_CELLS), jnp.float32),
        grid=(1,),
        in_specs=[full_spec(a) for a in ins],
        out_specs=pl.BlockSpec((n, LSTM_CELLS), lambda i: (0, 0)),
        compiler_params=pltpu.CompilerParams(
            dimension_semantics=("arbitrary",),
            vmem_limit_bytes=16 * 1024 * 1024,
        ),
    )(*ins)


# ------------------------------ parameters (synthetic) -------------------------
def init_params(key, c_in, H, W):
    hp, wp = H // POOL, W // POOL
    S = hp * wp
    ks = jax.random.split(key, 8)

    def w(k, shape):
        return jax.random.normal(k, shape, jnp.float32) * (1.0 / jnp.sqrt(shape[0]))

    return {
        # imagination_core.encode: 1x1 conv (frame_stack*C -> LATENT_C)
        "enc_w": w(ks[0], (c_in, LATENT_C)),
        "enc_b": jnp.zeros((LATENT_C,), jnp.float32),
        # imagination_core dynamics: 1x1 conv on [latent ; action], split into parts
        "dyn_w_lat": w(ks[1], (LATENT_C, LATENT_C)),
        "dyn_w_act": w(ks[2], (ACTION_SPACE, LATENT_C)),
        "dyn_b": jnp.zeros((LATENT_C,), jnp.float32),
        # imagination_core reward head
        "rew_w": w(ks[3], (LATENT_C, 1)),
        "rew_b": jnp.zeros((1,), jnp.float32),
        # EncoderCNNNetwork: 1x1 conv (LATENT_C -> ENC_C)
        "cnn_w": w(ks[4], (LATENT_C, ENC_C)),
        "cnn_b": jnp.zeros((ENC_C,), jnp.float32),
        # EncoderLSTMNetwork: input = encoder_cnn.output_size (+ reward, as own row)
        "wx_feat": w(ks[5], (ENC_C * S, 4 * LSTM_CELLS)),
        "wx_rew": w(ks[6], (1, 4 * LSTM_CELLS)),
        "wh": w(ks[7], (LSTM_CELLS, 4 * LSTM_CELLS)),
        "lstm_b": jnp.zeros((4 * LSTM_CELLS,), jnp.float32),
    }


def _block_diag(w, S):
    """Expand a per-position 1x1-conv weight (Cin, Cout) to block-diag (S*Cin, S*Cout)."""
    cin, cout = w.shape
    eye = jnp.eye(S, dtype=w.dtype)
    return (eye[:, None, :, None] * w[None, :, None, :]).reshape(S * cin, S * cout)


def pack_params(params, S):
    """One-time pack: block-diag conv weights, fused pooling/reward row, bf16 matmul operands."""
    bf16 = jnp.bfloat16
    return {
        "w_enc": _block_diag(params["enc_w"], S).astype(bf16),           # (S*cin, S*LC)
        "b_enc": jnp.tile(params["enc_b"], S)[None, :],                  # (1, S*LC) f32
        "w_dyn": _block_diag(params["dyn_w_lat"], S).astype(bf16),       # (S*LC, S*LC)
        "r_row": (jnp.tile(params["rew_w"][:, 0], S) / S)[None, :],      # (1, S*LC) f32
        "w_cnn": _block_diag(params["cnn_w"], S).astype(bf16),           # (S*LC, S*ENC_C)
        "b_cnn": jnp.tile(params["cnn_b"], S)[None, :],                  # (1, S*ENC_C) f32
        "wx": params["wx_feat"].astype(bf16),                            # (S*ENC_C, 4H)
        "wxr": params["wx_rew"],                                         # (1, 4H) f32
        "wh": params["wh"].astype(bf16),                                 # (H, 4H)
        # reward bias folded into the LSTM bias: b + rew_b * wx_rew
        "b_lstm": (params["lstm_b"] + params["rew_b"][0] * params["wx_rew"][0])[None, :],
        # kept in f32 for the (tiny) host-side action-bias computation
        "dyn_w_act": params["dyn_w_act"],
        "dyn_b": params["dyn_b"],
    }


# ---------------------------------- forward ------------------------------------
def latent_space_model_based_forward(packed, obs):
    B, CF, H, W = obs.shape
    # PyTorch: view(B, frame_stack, -1, H, W); encoder consumes all stacked channels.
    obs5 = obs.reshape(B, FRAME_STACK, -1, H, W)
    c_in = FRAME_STACK * obs5.shape[2]
    x = obs5.reshape(B, c_in, H, W).transpose(0, 2, 3, 1)            # NCHW -> NHWC

    hp, wp = H // POOL, W // POOL
    S = hp * wp
    x = x.reshape(B, hp, POOL, wp, POOL, c_in).mean(axis=(2, 4))     # avg-pool
    x_rows = x.reshape(B, S * c_in)                                  # rollout-rows layout

    N = ACTION_SPACE * B
    # latent_space.repeat(action_space, 1, 1, 1): rollout row a*B+b uses batch b
    x_tiled = jnp.tile(x_rows, (ACTION_SPACE, 1))                    # (N, S*c_in)
    # Each action repeated B times so rollout a*B+b evaluates action a on batch b
    # (full (batch, action) coverage per review; the literal torch indexing pairs
    #  action i % A with batch i % B, which duplicates pairs when gcd(A, B) > 1).
    actions = jnp.repeat(jnp.arange(ACTION_SPACE, dtype=jnp.int32), B)
    act_1h = jax.nn.one_hot(actions, ACTION_SPACE, dtype=jnp.float32)
    # hoisted action contribution of the dynamics conv (+ its bias), per rollout row
    act_bias = act_1h @ packed["dyn_w_act"] + packed["dyn_b"]        # (N, LC)
    abias = jnp.tile(act_bias, (1, S))                               # (N, S*LC)
    # TODO(synk): the original rollout encoder's per-step action selection
    # (distilled policy inside imagination_core) is not in the given source;
    # the initial action is reused for every imagined step.

    h = fused_rollout(x_tiled, abias, packed)                        # (N, LSTM_CELLS)

    # regroup: (A*B, H) stored a-major -> (B, A*H), all actions of batch b together
    out = h.reshape(ACTION_SPACE, B, LSTM_CELLS).transpose(1, 0, 2).reshape(B, -1)
    return out


# ------------------------------------ main --------------------------------------
if __name__ == "__main__":
    key = jax.random.PRNGKey(0)
    k_obs, k_param = jax.random.split(key)

    B, H, W = 2, 16, 16
    C = 1
    obs = jax.random.normal(k_obs, (B, FRAME_STACK * C, H, W), jnp.float32)
    params = init_params(k_param, FRAME_STACK * C, H, W)
    packed = pack_params(params, (H // POOL) * (W // POOL))

    fwd = jax.jit(latent_space_model_based_forward)
    out = jax.block_until_ready(fwd(packed, obs))

    assert out.shape == (B, ACTION_SPACE * LSTM_CELLS), out.shape
    assert out.dtype == jnp.float32
    assert bool(jnp.all(jnp.isfinite(out)))
    print("KERNEL_OK")
</pallas_src>

<mosaic_0001>
module attributes {stable_mosaic.version = 11 : i64} {
  func.func @_fused_rollout_kernel(%arg0: i32, %arg1: memref<8x64xf32, #tpu.memory_space<vmem>>, %arg2: memref<8x256xf32, #tpu.memory_space<vmem>>, %arg3: memref<64x256xbf16, #tpu.memory_space<vmem>>, %arg4: memref<1x256xf32, #tpu.memory_space<vmem>>, %arg5: memref<256x256xbf16, #tpu.memory_space<vmem>>, %arg6: memref<1x256xf32, #tpu.memory_space<vmem>>, %arg7: memref<256x128xbf16, #tpu.memory_space<vmem>>, %arg8: memref<1x128xf32, #tpu.memory_space<vmem>>, %arg9: memref<128x256xbf16, #tpu.memory_space<vmem>>, %arg10: memref<1x256xf32, #tpu.memory_space<vmem>>, %arg11: memref<64x256xbf16, #tpu.memory_space<vmem>>, %arg12: memref<1x256xf32, #tpu.memory_space<vmem>>, %arg13: memref<8x64xf32, #tpu.memory_space<vmem>>) attributes {dimension_semantics = [#tpu.dimension_semantics<arbitrary>], iteration_bounds = array<i64: 1>, scalar_prefetch = 0 : i64, scratch_operands = 0 : i64, tpu.core_type = #tpu.core_type<tc>, window_params = [{pipeline_mode = #tpu.pipeline_mode<synchronous>, transform_indices = @transform_0, window_bounds = array<i64: 8, 64>}, {pipeline_mode = #tpu.pipeline_mode<synchronous>, transform_indices = @transform_1, window_bounds = array<i64: 8, 256>}, {pipeline_mode = #tpu.pipeline_mode<synchronous>, transform_indices = @transform_2, window_bounds = array<i64: 64, 256>}, {pipeline_mode = #tpu.pipeline_mode<synchronous>, transform_indices = @transform_3, window_bounds = array<i64: 1, 256>}, {pipeline_mode = #tpu.pipeline_mode<synchronous>, transform_indices = @transform_4, window_bounds = array<i64: 256, 256>}, {pipeline_mode = #tpu.pipeline_mode<synchronous>, transform_indices = @transform_5, window_bounds = array<i64: 1, 256>}, {pipeline_mode = #tpu.pipeline_mode<synchronous>, transform_indices = @transform_6, window_bounds = array<i64: 256, 128>}, {pipeline_mode = #tpu.pipeline_mode<synchronous>, transform_indices = @transform_7, window_bounds = array<i64: 1, 128>}, {pipeline_mode = #tpu.pipeline_mode<synchronous>, transform_indices = @transform_8, window_bounds = array<i64: 128, 256>}, {pipeline_mode = #tpu.pipeline_mode<synchronous>, transform_indices = @transform_9, window_bounds = array<i64: 1, 256>}, {pipeline_mode = #tpu.pipeline_mode<synchronous>, transform_indices = @transform_10, window_bounds = array<i64: 64, 256>}, {pipeline_mode = #tpu.pipeline_mode<synchronous>, transform_indices = @transform_11, window_bounds = array<i64: 1, 256>}, {pipeline_mode = #tpu.pipeline_mode<synchronous>, transform_indices = @transform_12, window_bounds = array<i64: 8, 64>}]} {
    %c0 = arith.constant 0 : index
    %c0_0 = arith.constant 0 : index
    %0 = vector.load %arg1[%c0, %c0_0] : memref<8x64xf32, #tpu.memory_space<vmem>>, vector<8x64xf32>
    %1 = arith.truncf %0 : vector<8x64xf32> to vector<8x64xbf16>
    %c0_1 = arith.constant 0 : index
    %c0_2 = arith.constant 0 : index
    %2 = vector.load %arg3[%c0_1, %c0_2] : memref<64x256xbf16, #tpu.memory_space<vmem>>, vector<64x256xbf16>
    %cst = arith.constant dense<0.000000e+00> : vector<8x256xf32>
    %3 = tpu.matmul %1, %2, %cst {dimension_numbers = #tpu.dot_dimension_numbers<[1], [0], [0], [1], [0, 0, 1, 1], [], []>} : vector<8x64xbf16>, vector<64x256xbf16>, vector<8x256xf32> -> vector<8x256xf32>
    %c0_3 = arith.constant 0 : index
    %c0_4 = arith.constant 0 : index
    %4 = vector.load %arg4[%c0_3, %c0_4] : memref<1x256xf32, #tpu.memory_space<vmem>>, vector<1x256xf32>
    %5 = vector.broadcast %4 : vector<1x256xf32> to vector<8x256xf32>
    %6 = arith.addf %3, %5 : vector<8x256xf32>
    %cst_5 = arith.constant 0.000000e+00 : f32
    %7 = vector.broadcast %cst_5 : f32 to vector<8x256xf32>
    %8 = arith.maximumf %6, %7 : vector<8x256xf32>
    %cst_6 = arith.constant 0.000000e+00 : f32
    %9 = vector.broadcast %cst_6 : f32 to vector<8x64xf32>
    %cst_7 = arith.constant 0.000000e+00 : f32
    %10 = vector.broadcast %cst_7 : f32 to vector<8x64xf32>
    %c0_8 = arith.constant 0 : index
    %c0_9 = arith.constant 0 : index
    %11 = vector.load %arg2[%c0_8, %c0_9] : memref<8x256xf32, #tpu.memory_space<vmem>>, vector<8x256xf32>
    %c0_10 = arith.constant 0 : index
    %c0_11 = arith.constant 0 : index
    %12 = vector.load %arg6[%c0_10, %c0_11] : memref<1x256xf32, #tpu.memory_space<vmem>>, vector<1x256xf32>
    %c0_12 = arith.constant 0 : index
    %c0_13 = arith.constant 0 : index
    %13 = vector.load %arg8[%c0_12, %c0_13] : memref<1x128xf32, #tpu.memory_space<vmem>>, vector<1x128xf32>
    %c0_14 = arith.constant 0 : index
    %c0_15 = arith.constant 0 : index
    %14 = vector.load %arg10[%c0_14, %c0_15] : memref<1x256xf32, #tpu.memory_space<vmem>>, vector<1x256xf32>
    %c0_16 = arith.constant 0 : index
    %c0_17 = arith.constant 0 : index
    %15 = vector.load %arg12[%c0_16, %c0_17] : memref<1x256xf32, #tpu.memory_space<vmem>>, vector<1x256xf32>
    %c0_i32 = arith.constant 0 : i32
    %16 = arith.truncf %8 : vector<8x256xf32> to vector<8x256xbf16>
    %c0_18 = arith.constant 0 : index
    %c0_19 = arith.constant 0 : index
    %17 = vector.load %arg5[%c0_18, %c0_19] : memref<256x256xbf16, #tpu.memory_space<vmem>>, vector<256x256xbf16>
    %cst_20 = arith.constant dense<0.000000e+00> : vector<8x256xf32>
    %18 = tpu.matmul %16, %17, %cst_20 {dimension_numbers = #tpu.dot_dimension_numbers<[1], [0], [0], [1], [0, 0, 1, 1], [], []>} : vector<8x256xbf16>, vector<256x256xbf16>, vector<8x256xf32> -> vector<8x256xf32>
    %19 = arith.addf %18, %11 : vector<8x256xf32>
    %cst_21 = arith.constant 0.000000e+00 : f32
    %20 = vector.broadcast %cst_21 : f32 to vector<8x256xf32>
    %21 = arith.maximumf %19, %20 : vector<8x256xf32>
    %22 = vector.broadcast %12 : vector<1x256xf32> to vector<8x256xf32>
    %23 = arith.mulf %21, %22 : vector<8x256xf32>
    %cst_22 = arith.constant dense<0.000000e+00> : vector<8xf32>
    %24 = vector.multi_reduction <add>, %23, %cst_22 [1] : vector<8x256xf32> to vector<8xf32>
    %25 = vector.shape_cast %24 : vector<8xf32> to vector<8x1xf32>
    %26 = arith.truncf %21 : vector<8x256xf32> to vector<8x256xbf16>
    %c0_23 = arith.constant 0 : index
    %c0_24 = arith.constant 0 : index
    %27 = vector.load %arg7[%c0_23, %c0_24] : memref<256x128xbf16, #tpu.memory_space<vmem>>, vector<256x128xbf16>
    %cst_25 = arith.constant dense<0.000000e+00> : vector<8x128xf32>
    %28 = tpu.matmul %26, %27, %cst_25 {dimension_numbers = #tpu.dot_dimension_numbers<[1], [0], [0], [1], [0, 0, 1, 1], [], []>} : vector<8x256xbf16>, vector<256x128xbf16>, vector<8x128xf32> -> vector<8x128xf32>
    %29 = vector.broadcast %13 : vector<1x128xf32> to vector<8x128xf32>
    %30 = arith.addf %28, %29 : vector<8x128xf32>
    %cst_26 = arith.constant 0.000000e+00 : f32
    %31 = vector.broadcast %cst_26 : f32 to vector<8x128xf32>
    %32 = arith.maximumf %30, %31 : vector<8x128xf32>
    %33 = arith.truncf %32 : vector<8x128xf32> to vector<8x128xbf16>
    %c0_27 = arith.constant 0 : index
    %c0_28 = arith.constant 0 : index
    %34 = vector.load %arg9[%c0_27, %c0_28] : memref<128x256xbf16, #tpu.memory_space<vmem>>, vector<128x256xbf16>
    %cst_29 = arith.constant dense<0.000000e+00> : vector<8x256xf32>
    %35 = tpu.matmul %33, %34, %cst_29 {dimension_numbers = #tpu.dot_dimension_numbers<[1], [0], [0], [1], [0, 0, 1, 1], [], []>} : vector<8x128xbf16>, vector<128x256xbf16>, vector<8x256xf32> -> vector<8x256xf32>
    %36 = arith.truncf %9 : vector<8x64xf32> to vector<8x64xbf16>
    %c0_30 = arith.constant 0 : index
    %c0_31 = arith.constant 0 : index
    %37 = vector.load %arg11[%c0_30, %c0_31] : memref<64x256xbf16, #tpu.memory_space<vmem>>, vector<64x256xbf16>
    %cst_32 = arith.constant dense<0.000000e+00> : vector<8x256xf32>
    %38 = tpu.matmul %36, %37, %cst_32 {dimension_numbers = #tpu.dot_dimension_numbers<[1], [0], [0], [1], [0, 0, 1, 1], [], []>} : vector<8x64xbf16>, vector<64x256xbf16>, vector<8x256xf32> -> vector<8x256xf32>
    %39 = arith.addf %35, %38 : vector<8x256xf32>
    %40 = vector.broadcast %25 : vector<8x1xf32> to vector<8x256xf32>
    %41 = vector.broadcast %14 : vector<1x256xf32> to vector<8x256xf32>
    %42 = arith.mulf %40, %41 : vector<8x256xf32>
    %43 = arith.addf %39, %42 : vector<8x256xf32>
    %44 = vector.broadcast %15 : vector<1x256xf32> to vector<8x256xf32>
    %45 = arith.addf %43, %44 : vector<8x256xf32>
    %46 = vector.extract_strided_slice %45 {offsets = [0, 0], sizes = [8, 64], strides = [1, 1]} : vector<8x256xf32> to vector<8x64xf32>
    %47 = arith.negf %46 : vector<8x64xf32>
    %48 = math.exp %47 : vector<8x64xf32>
    %cst_33 = arith.constant 1.000000e+00 : f32
    %49 = vector.broadcast %cst_33 : f32 to vector<8x64xf32>
    %50 = arith.addf %49, %48 : vector<8x64xf32>
    %51 = arith.divf %49, %50 : vector<8x64xf32>
    %52 = vector.extract_strided_slice %45 {offsets = [0, 64], sizes = [8, 64], strides = [1, 1]} : vector<8x256xf32> to vector<8x64xf32>
    %53 = arith.negf %52 : vector<8x64xf32>
    %54 = math.exp %53 : vector<8x64xf32>
    %cst_34 = arith.constant 1.000000e+00 : f32
    %55 = vector.broadcast %cst_34 : f32 to vector<8x64xf32>
    %56 = arith.addf %55, %54 : vector<8x64xf32>
    %57 = arith.divf %55, %56 : vector<8x64xf32>
    %58 = vector.extract_strided_slice %45 {offsets = [0, 128], sizes = [8, 64], strides = [1, 1]} : vector<8x256xf32> to vector<8x64xf32>
    %59 = math.tanh %58 : vector<8x64xf32>
    %60 = vector.extract_strided_slice %45 {offsets = [0, 192], sizes = [8, 64], strides = [1, 1]} : vector<8x256xf32> to vector<8x64xf32>
    %61 = arith.negf %60 : vector<8x64xf32>
    %62 = math.exp %61 : vector<8x64xf32>
    %cst_35 = arith.constant 1.000000e+00 : f32
    %63 = vector.broadcast %cst_35 : f32 to vector<8x64xf32>
    %64 = arith.addf %63, %62 : vector<8x64xf32>
    %65 = arith.divf %63, %64 : vector<8x64xf32>
    %66 = arith.mulf %57, %10 : vector<8x64xf32>
    %67 = arith.mulf %51, %59 : vector<8x64xf32>
    %68 = arith.addf %66, %67 : vector<8x64xf32>
    %69 = math.tanh %68 : vector<8x64xf32>
    %70 = arith.mulf %65, %69 : vector<8x64xf32>
    %c1_i32 = arith.constant 1 : i32
    %71 = arith.truncf %21 : vector<8x256xf32> to vector<8x256xbf16>
    %c0_36 = arith.constant 0 : index
    %c0_37 = arith.constant 0 : index
    %72 = vector.load %arg5[%c0_36, %c0_37] : memref<256x256xbf16, #tpu.memory_space<vmem>>, vector<256x256xbf16>
    %cst_38 = arith.constant dense<0.000000e+00> : vector<8x256xf32>
    %73 = tpu.matmul %71, %72, %cst_38 {dimension_numbers = #tpu.dot_dimension_numbers<[1], [0], [0], [1], [0, 0, 1, 1], [], []>} : vector<8x256xbf16>, vector<256x256xbf16>, vector<8x256xf32> -> vector<8x256xf32>
    %74 = arith.addf %73, %11 : vector<8x256xf32>
    %cst_39 = arith.constant 0.000000e+00 : f32
    %75 = vector.broadcast %cst_39 : f32 to vector<8x256xf32>
    %76 = arith.maximumf %74, %75 : vector<8x256xf32>
    %77 = vector.broadcast %12 : vector<1x256xf32> to vector<8x256xf32>
    %78 = arith.mulf %76, %77 : vector<8x256xf32>
    %cst_40 = arith.constant dense<0.000000e+00> : vector<8xf32>
    %79 = vector.multi_reduction <add>, %78, %cst_40 [1] : vector<8x256xf32> to vector<8xf32>
    %80 = vector.shape_cast %79 : vector<8xf32> to vector<8x1xf32>
    %81 = arith.truncf %76 : vector<8x256xf32> to vector<8x256xbf16>
    %c0_41 = arith.constant 0 : index
    %c0_42 = arith.constant 0 : index
    %82 = vector.load %arg7[%c0_41, %c0_42] : memref<256x128xbf16, #tpu.memory_space<vmem>>, vector<256x128xbf16>
    %cst_43 = arith.constant dense<0.000000e+00> : vector<8x128xf32>
    %83 = tpu.matmul %81, %82, %cst_43 {dimension_numbers = #tpu.dot_dimension_numbers<[1], [0], [0], [1], [0, 0, 1, 1], [], []>} : vector<8x256xbf16>, vector<256x128xbf16>, vector<8x128xf32> -> vector<8x128xf32>
    %84 = vector.broadcast %13 : vector<1x128xf32> to vector<8x128xf32>
    %85 = arith.addf %83, %84 : vector<8x128xf32>
    %cst_44 = arith.constant 0.000000e+00 : f32
    %86 = vector.broadcast %cst_44 : f32 to vector<8x128xf32>
    %87 = arith.maximumf %85, %86 : vector<8x128xf32>
    %88 = arith.truncf %87 : vector<8x128xf32> to vector<8x128xbf16>
    %c0_45 = arith.constant 0 : index
    %c0_46 = arith.constant 0 : index
    %89 = vector.load %arg9[%c0_45, %c0_46] : memref<128x256xbf16, #tpu.memory_space<vmem>>, vector<128x256xbf16>
    %cst_47 = arith.constant dense<0.000000e+00> : vector<8x256xf32>
    %90 = tpu.matmul %88, %89, %cst_47 {dimension_numbers = #tpu.dot_dimension_numbers<[1], [0], [0], [1], [0, 0, 1, 1], [], []>} : vector<8x128xbf16>, vector<128x256xbf16>, vector<8x256xf32> -> vector<8x256xf32>
    %91 = arith.truncf %70 : vector<8x64xf32> to vector<8x64xbf16>
    %c0_48 = arith.constant 0 : index
    %c0_49 = arith.constant 0 : index
    %92 = vector.load %arg11[%c0_48, %c0_49] : memref<64x256xbf16, #tpu.memory_space<vmem>>, vector<64x256xbf16>
    %cst_50 = arith.constant dense<0.000000e+00> : vector<8x256xf32>
    %93 = tpu.matmul %91, %92, %cst_50 {dimension_numbers = #tpu.dot_dimension_numbers<[1], [0], [0], [1], [0, 0, 1, 1], [], []>} : vector<8x64xbf16>, vector<64x256xbf16>, vector<8x256xf32> -> vector<8x256xf32>
    %94 = arith.addf %90, %93 : vector<8x256xf32>
    %95 = vector.broadcast %80 : vector<8x1xf32> to vector<8x256xf32>
    %96 = vector.broadcast %14 : vector<1x256xf32> to vector<8x256xf32>
    %97 = arith.mulf %95, %96 : vector<8x256xf32>
    %98 = arith.addf %94, %97 : vector<8x256xf32>
    %99 = vector.broadcast %15 : vector<1x256xf32> to vector<8x256xf32>
    %100 = arith.addf %98, %99 : vector<8x256xf32>
    %101 = vector.extract_strided_slice %100 {offsets = [0, 0], sizes = [8, 64], strides = [1, 1]} : vector<8x256xf32> to vector<8x64xf32>
    %102 = arith.negf %101 : vector<8x64xf32>
    %103 = math.exp %102 : vector<8x64xf32>
    %cst_51 = arith.constant 1.000000e+00 : f32
    %104 = vector.broadcast %cst_51 : f32 to vector<8x64xf32>
    %105 = arith.addf %104, %103 : vector<8x64xf32>
    %106 = arith.divf %104, %105 : vector<8x64xf32>
    %107 = vector.extract_strided_slice %100 {offsets = [0, 64], sizes = [8, 64], strides = [1, 1]} : vector<8x256xf32> to vector<8x64xf32>
    %108 = arith.negf %107 : vector<8x64xf32>
    %109 = math.exp %108 : vector<8x64xf32>
    %cst_52 = arith.constant 1.000000e+00 : f32
    %110 = vector.broadcast %cst_52 : f32 to vector<8x64xf32>
    %111 = arith.addf %110, %109 : vector<8x64xf32>
    %112 = arith.divf %110, %111 : vector<8x64xf32>
    %113 = vector.extract_strided_slice %100 {offsets = [0, 128], sizes = [8, 64], strides = [1, 1]} : vector<8x256xf32> to vector<8x64xf32>
    %114 = math.tanh %113 : vector<8x64xf32>
    %115 = vector.extract_strided_slice %100 {offsets = [0, 192], sizes = [8, 64], strides = [1, 1]} : vector<8x256xf32> to vector<8x64xf32>
    %116 = arith.negf %115 : vector<8x64xf32>
    %117 = math.exp %116 : vector<8x64xf32>
    %cst_53 = arith.constant 1.000000e+00 : f32
    %118 = vector.broadcast %cst_53 : f32 to vector<8x64xf32>
    %119 = arith.addf %118, %117 : vector<8x64xf32>
    %120 = arith.divf %118, %119 : vector<8x64xf32>
    %121 = arith.mulf %112, %68 : vector<8x64xf32>
    %122 = arith.mulf %106, %114 : vector<8x64xf32>
    %123 = arith.addf %121, %122 : vector<8x64xf32>
    %124 = math.tanh %123 : vector<8x64xf32>
    %125 = arith.mulf %120, %124 : vector<8x64xf32>
    %c2_i32 = arith.constant 2 : i32
    %126 = arith.truncf %76 : vector<8x256xf32> to vector<8x256xbf16>
    %c0_54 = arith.constant 0 : index
    %c0_55 = arith.constant 0 : index
    %127 = vector.load %arg5[%c0_54, %c0_55] : memref<256x256xbf16, #tpu.memory_space<vmem>>, vector<256x256xbf16>
    %cst_56 = arith.constant dense<0.000000e+00> : vector<8x256xf32>
    %128 = tpu.matmul %126, %127, %cst_56 {dimension_numbers = #tpu.dot_dimension_numbers<[1], [0], [0], [1], [0, 0, 1, 1], [], []>} : vector<8x256xbf16>, vector<256x256xbf16>, vector<8x256xf32> -> vector<8x256xf32>
    %129 = arith.addf %128, %11 : vector<8x256xf32>
    %cst_57 = arith.constant 0.000000e+00 : f32
    %130 = vector.broadcast %cst_57 : f32 to vector<8x256xf32>
    %131 = arith.maximumf %129, %130 : vector<8x256xf32>
    %132 = vector.broadcast %12 : vector<1x256xf32> to vector<8x256xf32>
    %133 = arith.mulf %131, %132 : vector<8x256xf32>
    %cst_58 = arith.constant dense<0.000000e+00> : vector<8xf32>
    %134 = vector.multi_reduction <add>, %133, %cst_58 [1] : vector<8x256xf32> to vector<8xf32>
    %135 = vector.shape_cast %134 : vector<8xf32> to vector<8x1xf32>
    %136 = arith.truncf %131 : vector<8x256xf32> to vector<8x256xbf16>
    %c0_59 = arith.constant 0 : index
    %c0_60 = arith.constant 0 : index
    %137 = vector.load %arg7[%c0_59, %c0_60] : memref<256x128xbf16, #tpu.memory_space<vmem>>, vector<256x128xbf16>
    %cst_61 = arith.constant dense<0.000000e+00> : vector<8x128xf32>
    %138 = tpu.matmul %136, %137, %cst_61 {dimension_numbers = #tpu.dot_dimension_numbers<[1], [0], [0], [1], [0, 0, 1, 1], [], []>} : vector<8x256xbf16>, vector<256x128xbf16>, vector<8x128xf32> -> vector<8x128xf32>
    %139 = vector.broadcast %13 : vector<1x128xf32> to vector<8x128xf32>
    %140 = arith.addf %138, %139 : vector<8x128xf32>
    %cst_62 = arith.constant 0.000000e+00 : f32
    %141 = vector.broadcast %cst_62 : f32 to vector<8x128xf32>
    %142 = arith.maximumf %140, %141 : vector<8x128xf32>
    %143 = arith.truncf %142 : vector<8x128xf32> to vector<8x128xbf16>
    %c0_63 = arith.constant 0 : index
    %c0_64 = arith.constant 0 : index
    %144 = vector.load %arg9[%c0_63, %c0_64] : memref<128x256xbf16, #tpu.memory_space<vmem>>, vector<128x256xbf16>
    %cst_65 = arith.constant dense<0.000000e+00> : vector<8x256xf32>
    %145 = tpu.matmul %143, %144, %cst_65 {dimension_numbers = #tpu.dot_dimension_numbers<[1], [0], [0], [1], [0, 0, 1, 1], [], []>} : vector<8x128xbf16>, vector<128x256xbf16>, vector<8x256xf32> -> vector<8x256xf32>
    %146 = arith.truncf %125 : vector<8x64xf32> to vector<8x64xbf16>
    %c0_66 = arith.constant 0 : index
    %c0_67 = arith.constant 0 : index
    %147 = vector.load %arg11[%c0_66, %c0_67] : memref<64x256xbf16, #tpu.memory_space<vmem>>, vector<64x256xbf16>
    %cst_68 = arith.constant dense<0.000000e+00> : vector<8x256xf32>
    %148 = tpu.matmul %146, %147, %cst_68 {dimension_numbers = #tpu.dot_dimension_numbers<[1], [0], [0], [1], [0, 0, 1, 1], [], []>} : vector<8x64xbf16>, vector<64x256xbf16>, vector<8x256xf32> -> vector<8x256xf32>
    %149 = arith.addf %145, %148 : vector<8x256xf32>
    %150 = vector.broadcast %135 : vector<8x1xf32> to vector<8x256xf32>
    %151 = vector.broadcast %14 : vector<1x256xf32> to vector<8x256xf32>
    %152 = arith.mulf %150, %151 : vector<8x256xf32>
    %153 = arith.addf %149, %152 : vector<8x256xf32>
    %154 = vector.broadcast %15 : vector<1x256xf32> to vector<8x256xf32>
    %155 = arith.addf %153, %154 : vector<8x256xf32>
    %156 = vector.extract_strided_slice %155 {offsets = [0, 0], sizes = [8, 64], strides = [1, 1]} : vector<8x256xf32> to vector<8x64xf32>
    %157 = arith.negf %156 : vector<8x64xf32>
    %158 = math.exp %157 : vector<8x64xf32>
    %cst_69 = arith.constant 1.000000e+00 : f32
    %159 = vector.broadcast %cst_69 : f32 to vector<8x64xf32>
    %160 = arith.addf %159, %158 : vector<8x64xf32>
    %161 = arith.divf %159, %160 : vector<8x64xf32>
    %162 = vector.extract_strided_slice %155 {offsets = [0, 64], sizes = [8, 64], strides = [1, 1]} : vector<8x256xf32> to vector<8x64xf32>
    %163 = arith.negf %162 : vector<8x64xf32>
    %164 = math.exp %163 : vector<8x64xf32>
    %cst_70 = arith.constant 1.000000e+00 : f32
    %165 = vector.broadcast %cst_70 : f32 to vector<8x64xf32>
    %166 = arith.addf %165, %164 : vector<8x64xf32>
    %167 = arith.divf %165, %166 : vector<8x64xf32>
    %168 = vector.extract_strided_slice %155 {offsets = [0, 128], sizes = [8, 64], strides = [1, 1]} : vector<8x256xf32> to vector<8x64xf32>
    %169 = math.tanh %168 : vector<8x64xf32>
    %170 = vector.extract_strided_slice %155 {offsets = [0, 192], sizes = [8, 64], strides = [1, 1]} : vector<8x256xf32> to vector<8x64xf32>
    %171 = arith.negf %170 : vector<8x64xf32>
    %172 = math.exp %171 : vector<8x64xf32>
    %cst_71 = arith.constant 1.000000e+00 : f32
    %173 = vector.broadcast %cst_71 : f32 to vector<8x64xf32>
    %174 = arith.addf %173, %172 : vector<8x64xf32>
    %175 = arith.divf %173, %174 : vector<8x64xf32>
    %176 = arith.mulf %167, %123 : vector<8x64xf32>
    %177 = arith.mulf %161, %169 : vector<8x64xf32>
    %178 = arith.addf %176, %177 : vector<8x64xf32>
    %179 = math.tanh %178 : vector<8x64xf32>
    %180 = arith.mulf %175, %179 : vector<8x64xf32>
    %c3_i32 = arith.constant 3 : i32
    %181 = arith.truncf %131 : vector<8x256xf32> to vector<8x256xbf16>
    %c0_72 = arith.constant 0 : index
    %c0_73 = arith.constant 0 : index
    %182 = vector.load %arg5[%c0_72, %c0_73] : memref<256x256xbf16, #tpu.memory_space<vmem>>, vector<256x256xbf16>
    %cst_74 = arith.constant dense<0.000000e+00> : vector<8x256xf32>
    %183 = tpu.matmul %181, %182, %cst_74 {dimension_numbers = #tpu.dot_dimension_numbers<[1], [0], [0], [1], [0, 0, 1, 1], [], []>} : vector<8x256xbf16>, vector<256x256xbf16>, vector<8x256xf32> -> vector<8x256xf32>
    %184 = arith.addf %183, %11 : vector<8x256xf32>
    %cst_75 = arith.constant 0.000000e+00 : f32
    %185 = vector.broadcast %cst_75 : f32 to vector<8x256xf32>
    %186 = arith.maximumf %184, %185 : vector<8x256xf32>
    %187 = vector.broadcast %12 : vector<1x256xf32> to vector<8x256xf32>
    %188 = arith.mulf %186, %187 : vector<8x256xf32>
    %cst_76 = arith.constant dense<0.000000e+00> : vector<8xf32>
    %189 = vector.multi_reduction <add>, %188, %cst_76 [1] : vector<8x256xf32> to vector<8xf32>
    %190 = vector.shape_cast %189 : vector<8xf32> to vector<8x1xf32>
    %191 = arith.truncf %186 : vector<8x256xf32> to vector<8x256xbf16>
    %c0_77 = arith.constant 0 : index
    %c0_78 = arith.constant 0 : index
    %192 = vector.load %arg7[%c0_77, %c0_78] : memref<256x128xbf16, #tpu.memory_space<vmem>>, vector<256x128xbf16>
    %cst_79 = arith.constant dense<0.000000e+00> : vector<8x128xf32>
    %193 = tpu.matmul %191, %192, %cst_79 {dimension_numbers = #tpu.dot_dimension_numbers<[1], [0], [0], [1], [0, 0, 1, 1], [], []>} : vector<8x256xbf16>, vector<256x128xbf16>, vector<8x128xf32> -> vector<8x128xf32>
    %194 = vector.broadcast %13 : vector<1x128xf32> to vector<8x128xf32>
    %195 = arith.addf %193, %194 : vector<8x128xf32>
    %cst_80 = arith.constant 0.000000e+00 : f32
    %196 = vector.broadcast %cst_80 : f32 to vector<8x128xf32>
    %197 = arith.maximumf %195, %196 : vector<8x128xf32>
    %198 = arith.truncf %197 : vector<8x128xf32> to vector<8x128xbf16>
    %c0_81 = arith.constant 0 : index
    %c0_82 = arith.constant 0 : index
    %199 = vector.load %arg9[%c0_81, %c0_82] : memref<128x256xbf16, #tpu.memory_space<vmem>>, vector<128x256xbf16>
    %cst_83 = arith.constant dense<0.000000e+00> : vector<8x256xf32>
    %200 = tpu.matmul %198, %199, %cst_83 {dimension_numbers = #tpu.dot_dimension_numbers<[1], [0], [0], [1], [0, 0, 1, 1], [], []>} : vector<8x128xbf16>, vector<128x256xbf16>, vector<8x256xf32> -> vector<8x256xf32>
    %201 = arith.truncf %180 : vector<8x64xf32> to vector<8x64xbf16>
    %c0_84 = arith.constant 0 : index
    %c0_85 = arith.constant 0 : index
    %202 = vector.load %arg11[%c0_84, %c0_85] : memref<64x256xbf16, #tpu.memory_space<vmem>>, vector<64x256xbf16>
    %cst_86 = arith.constant dense<0.000000e+00> : vector<8x256xf32>
    %203 = tpu.matmul %201, %202, %cst_86 {dimension_numbers = #tpu.dot_dimension_numbers<[1], [0], [0], [1], [0, 0, 1, 1], [], []>} : vector<8x64xbf16>, vector<64x256xbf16>, vector<8x256xf32> -> vector<8x256xf32>
    %204 = arith.addf %200, %203 : vector<8x256xf32>
    %205 = vector.broadcast %190 : vector<8x1xf32> to vector<8x256xf32>
    %206 = vector.broadcast %14 : vector<1x256xf32> to vector<8x256xf32>
    %207 = arith.mulf %205, %206 : vector<8x256xf32>
    %208 = arith.addf %204, %207 : vector<8x256xf32>
    %209 = vector.broadcast %15 : vector<1x256xf32> to vector<8x256xf32>
    %210 = arith.addf %208, %209 : vector<8x256xf32>
    %211 = vector.extract_strided_slice %210 {offsets = [0, 0], sizes = [8, 64], strides = [1, 1]} : vector<8x256xf32> to vector<8x64xf32>
    %212 = arith.negf %211 : vector<8x64xf32>
    %213 = math.exp %212 : vector<8x64xf32>
    %cst_87 = arith.constant 1.000000e+00 : f32
    %214 = vector.broadcast %cst_87 : f32 to vector<8x64xf32>
    %215 = arith.addf %214, %213 : vector<8x64xf32>
    %216 = arith.divf %214, %215 : vector<8x64xf32>
    %217 = vector.extract_strided_slice %210 {offsets = [0, 64], sizes = [8, 64], strides = [1, 1]} : vector<8x256xf32> to vector<8x64xf32>
    %218 = arith.negf %217 : vector<8x64xf32>
    %219 = math.exp %218 : vector<8x64xf32>
    %cst_88 = arith.constant 1.000000e+00 : f32
    %220 = vector.broadcast %cst_88 : f32 to vector<8x64xf32>
    %221 = arith.addf %220, %219 : vector<8x64xf32>
    %222 = arith.divf %220, %221 : vector<8x64xf32>
    %223 = vector.extract_strided_slice %210 {offsets = [0, 128], sizes = [8, 64], strides = [1, 1]} : vector<8x256xf32> to vector<8x64xf32>
    %224 = math.tanh %223 : vector<8x64xf32>
    %225 = vector.extract_strided_slice %210 {offsets = [0, 192], sizes = [8, 64], strides = [1, 1]} : vector<8x256xf32> to vector<8x64xf32>
    %226 = arith.negf %225 : vector<8x64xf32>
    %227 = math.exp %226 : vector<8x64xf32>
    %cst_89 = arith.constant 1.000000e+00 : f32
    %228 = vector.broadcast %cst_89 : f32 to vector<8x64xf32>
    %229 = arith.addf %228, %227 : vector<8x64xf32>
    %230 = arith.divf %228, %229 : vector<8x64xf32>
    %231 = arith.mulf %222, %178 : vector<8x64xf32>
    %232 = arith.mulf %216, %224 : vector<8x64xf32>
    %233 = arith.addf %231, %232 : vector<8x64xf32>
    %234 = math.tanh %233 : vector<8x64xf32>
    %235 = arith.mulf %230, %234 : vector<8x64xf32>
    %c4_i32 = arith.constant 4 : i32
    %236 = arith.truncf %186 : vector<8x256xf32> to vector<8x256xbf16>
    %c0_90 = arith.constant 0 : index
    %c0_91 = arith.constant 0 : index
    %237 = vector.load %arg5[%c0_90, %c0_91] : memref<256x256xbf16, #tpu.memory_space<vmem>>, vector<256x256xbf16>
    %cst_92 = arith.constant dense<0.000000e+00> : vector<8x256xf32>
    %238 = tpu.matmul %236, %237, %cst_92 {dimension_numbers = #tpu.dot_dimension_numbers<[1], [0], [0], [1], [0, 0, 1, 1], [], []>} : vector<8x256xbf16>, vector<256x256xbf16>, vector<8x256xf32> -> vector<8x256xf32>
    %239 = arith.addf %238, %11 : vector<8x256xf32>
    %cst_93 = arith.constant 0.000000e+00 : f32
    %240 = vector.broadcast %cst_93 : f32 to vector<8x256xf32>
    %241 = arith.maximumf %239, %240 : vector<8x256xf32>
    %242 = vector.broadcast %12 : vector<1x256xf32> to vector<8x256xf32>
    %243 = arith.mulf %241, %242 : vector<8x256xf32>
    %cst_94 = arith.constant dense<0.000000e+00> : vector<8xf32>
    %244 = vector.multi_reduction <add>, %243, %cst_94 [1] : vector<8x256xf32> to vector<8xf32>
    %245 = vector.shape_cast %244 : vector<8xf32> to vector<8x1xf32>
    %246 = arith.truncf %241 : vector<8x256xf32> to vector<8x256xbf16>
    %c0_95 = arith.constant 0 : index
    %c0_96 = arith.constant 0 : index
    %247 = vector.load %arg7[%c0_95, %c0_96] : memref<256x128xbf16, #tpu.memory_space<vmem>>, vector<256x128xbf16>
    %cst_97 = arith.constant dense<0.000000e+00> : vector<8x128xf32>
    %248 = tpu.matmul %246, %247, %cst_97 {dimension_numbers = #tpu.dot_dimension_numbers<[1], [0], [0], [1], [0, 0, 1, 1], [], []>} : vector<8x256xbf16>, vector<256x128xbf16>, vector<8x128xf32> -> vector<8x128xf32>
    %249 = vector.broadcast %13 : vector<1x128xf32> to vector<8x128xf32>
    %250 = arith.addf %248, %249 : vector<8x128xf32>
    %cst_98 = arith.constant 0.000000e+00 : f32
    %251 = vector.broadcast %cst_98 : f32 to vector<8x128xf32>
    %252 = arith.maximumf %250, %251 : vector<8x128xf32>
    %253 = arith.truncf %252 : vector<8x128xf32> to vector<8x128xbf16>
    %c0_99 = arith.constant 0 : index
    %c0_100 = arith.constant 0 : index
    %254 = vector.load %arg9[%c0_99, %c0_100] : memref<128x256xbf16, #tpu.memory_space<vmem>>, vector<128x256xbf16>
    %cst_101 = arith.constant dense<0.000000e+00> : vector<8x256xf32>
    %255 = tpu.matmul %253, %254, %cst_101 {dimension_numbers = #tpu.dot_dimension_numbers<[1], [0], [0], [1], [0, 0, 1, 1], [], []>} : vector<8x128xbf16>, vector<128x256xbf16>, vector<8x256xf32> -> vector<8x256xf32>
    %256 = arith.truncf %235 : vector<8x64xf32> to vector<8x64xbf16>
    %c0_102 = arith.constant 0 : index
    %c0_103 = arith.constant 0 : index
    %257 = vector.load %arg11[%c0_102, %c0_103] : memref<64x256xbf16, #tpu.memory_space<vmem>>, vector<64x256xbf16>
    %cst_104 = arith.constant dense<0.000000e+00> : vector<8x256xf32>
    %258 = tpu.matmul %256, %257, %cst_104 {dimension_numbers = #tpu.dot_dimension_numbers<[1], [0], [0], [1], [0, 0, 1, 1], [], []>} : vector<8x64xbf16>, vector<64x256xbf16>, vector<8x256xf32> -> vector<8x256xf32>
    %259 = arith.addf %255, %258 : vector<8x256xf32>
    %260 = vector.broadcast %245 : vector<8x1xf32> to vector<8x256xf32>
    %261 = vector.broadcast %14 : vector<1x256xf32> to vector<8x256xf32>
    %262 = arith.mulf %260, %261 : vector<8x256xf32>
    %263 = arith.addf %259, %262 : vector<8x256xf32>
    %264 = vector.broadcast %15 : vector<1x256xf32> to vector<8x256xf32>
    %265 = arith.addf %263, %264 : vector<8x256xf32>
    %266 = vector.extract_strided_slice %265 {offsets = [0, 0], sizes = [8, 64], strides = [1, 1]} : vector<8x256xf32> to vector<8x64xf32>
    %267 = arith.negf %266 : vector<8x64xf32>
    %268 = math.exp %267 : vector<8x64xf32>
    %cst_105 = arith.constant 1.000000e+00 : f32
    %269 = vector.broadcast %cst_105 : f32 to vector<8x64xf32>
    %270 = arith.addf %269, %268 : vector<8x64xf32>
    %271 = arith.divf %269, %270 : vector<8x64xf32>
    %272 = vector.extract_strided_slice %265 {offsets = [0, 64], sizes = [8, 64], strides = [1, 1]} : vector<8x256xf32> to vector<8x64xf32>
    %273 = arith.negf %272 : vector<8x64xf32>
    %274 = math.exp %273 : vector<8x64xf32>
    %cst_106 = arith.constant 1.000000e+00 : f32
    %275 = vector.broadcast %cst_106 : f32 to vector<8x64xf32>
    %276 = arith.addf %275, %274 : vector<8x64xf32>
    %277 = arith.divf %275, %276 : vector<8x64xf32>
    %278 = vector.extract_strided_slice %265 {offsets = [0, 128], sizes = [8, 64], strides = [1, 1]} : vector<8x256xf32> to vector<8x64xf32>
    %279 = math.tanh %278 : vector<8x64xf32>
    %280 = vector.extract_strided_slice %265 {offsets = [0, 192], sizes = [8, 64], strides = [1, 1]} : vector<8x256xf32> to vector<8x64xf32>
    %281 = arith.negf %280 : vector<8x64xf32>
    %282 = math.exp %281 : vector<8x64xf32>
    %cst_107 = arith.constant 1.000000e+00 : f32
    %283 = vector.broadcast %cst_107 : f32 to vector<8x64xf32>
    %284 = arith.addf %283, %282 : vector<8x64xf32>
    %285 = arith.divf %283, %284 : vector<8x64xf32>
    %286 = arith.mulf %277, %233 : vector<8x64xf32>
    %287 = arith.mulf %271, %279 : vector<8x64xf32>
    %288 = arith.addf %286, %287 : vector<8x64xf32>
    %289 = math.tanh %288 : vector<8x64xf32>
    %290 = arith.mulf %285, %289 : vector<8x64xf32>
    %c0_108 = arith.constant 0 : index
    %c0_109 = arith.constant 0 : index
    %291 = vector.load %arg13[%c0_108, %c0_109] : memref<8x64xf32, #tpu.memory_space<vmem>>, vector<8x64xf32>
    tpu.vector_store %arg13[%c0_108, %c0_109], %290 {strides = array<i32>} : memref<8x64xf32, #tpu.memory_space<vmem>>, vector<8x64xf32>,
    return
  }
  func.func @transform_0(%arg0: i32) -> (i32, i32) {
    %c0_i32 = arith.constant 0 : i32
    %c0_i32_0 = arith.constant 0 : i32
    %c0_i32_1 = arith.constant 0 : i32
    return %c0_i32, %c0_i32_0 : i32, i32
  }
  func.func @transform_1(%arg0: i32) -> (i32, i32) {
    %c0_i32 = arith.constant 0 : i32
    %c0_i32_0 = arith.constant 0 : i32
    %c0_i32_1 = arith.constant 0 : i32
    return %c0_i32, %c0_i32_0 : i32, i32
  }
  func.func @transform_2(%arg0: i32) -> (i32, i32) {
    %c0_i32 = arith.constant 0 : i32
    %c0_i32_0 = arith.constant 0 : i32
    %c0_i32_1 = arith.constant 0 : i32
    return %c0_i32, %c0_i32_0 : i32, i32
  }
  func.func @transform_3(%arg0: i32) -> (i32, i32) {
    %c0_i32 = arith.constant 0 : i32
    %c0_i32_0 = arith.constant 0 : i32
    %c0_i32_1 = arith.constant 0 : i32
    return %c0_i32, %c0_i32_0 : i32, i32
  }
  func.func @transform_4(%arg0: i32) -> (i32, i32) {
    %c0_i32 = arith.constant 0 : i32
    %c0_i32_0 = arith.constant 0 : i32
    %c0_i32_1 = arith.constant 0 : i32
    return %c0_i32, %c0_i32_0 : i32, i32
  }
  func.func @transform_5(%arg0: i32) -> (i32, i32) {
    %c0_i32 = arith.constant 0 : i32
    %c0_i32_0 = arith.constant 0 : i32
    %c0_i32_1 = arith.constant 0 : i32
    return %c0_i32, %c0_i32_0 : i32, i32
  }
  func.func @transform_6(%arg0: i32) -> (i32, i32) {
    %c0_i32 = arith.constant 0 : i32
    %c0_i32_0 = arith.constant 0 : i32
    %c0_i32_1 = arith.constant 0 : i32
    return %c0_i32, %c0_i32_0 : i32, i32
  }
  func.func @transform_7(%arg0: i32) -> (i32, i32) {
    %c0_i32 = arith.constant 0 : i32
    %c0_i32_0 = arith.constant 0 : i32
    %c0_i32_1 = arith.constant 0 : i32
    return %c0_i32, %c0_i32_0 : i32, i32
  }
  func.func @transform_8(%arg0: i32) -> (i32, i32) {
    %c0_i32 = arith.constant 0 : i32
    %c0_i32_0 = arith.constant 0 : i32
    %c0_i32_1 = arith.constant 0 : i32
    return %c0_i32, %c0_i32_0 : i32, i32
  }
  func.func @transform_9(%arg0: i32) -> (i32, i32) {
    %c0_i32 = arith.constant 0 : i32
    %c0_i32_0 = arith.constant 0 : i32
    %c0_i32_1 = arith.constant 0 : i32
    return %c0_i32, %c0_i32_0 : i32, i32
  }
  func.func @transform_10(%arg0: i32) -> (i32, i32) {
    %c0_i32 = arith.constant 0 : i32
    %c0_i32_0 = arith.constant 0 : i32
    %c0_i32_1 = arith.constant 0 : i32
    return %c0_i32, %c0_i32_0 : i32, i32
  }
  func.func @transform_11(%arg0: i32) -> (i32, i32) {
    %c0_i32 = arith.constant 0 : i32
    %c0_i32_0 = arith.constant 0 : i32
    %c0_i32_1 = arith.constant 0 : i32
    return %c0_i32, %c0_i32_0 : i32, i32
  }
  func.func @transform_12(%arg0: i32) -> (i32, i32) {
    %c0_i32 = arith.constant 0 : i32
    %c0_i32_0 = arith.constant 0 : i32
    %c0_i32_1 = arith.constant 0 : i32
    return %c0_i32, %c0_i32_0 : i32, i32
  }
}

</mosaic_0001>

<llo_original>
// kernel: eq.1
$region0: #{eq.1}
  %s0 = inlined_call_operand.vmem [shape: s32[4,2], index: 0, kind: input, shape index: {}]
  %s1 = inlined_call_operand.vmem [shape: s32[8], index: 1, kind: output, shape index: {}]
  $region1: #{eq.1} parent=0
    #allocation0 [shape = 'u8[4096]{0}', space=vmem, size = 0x1000, scoped, tag = 'scoped mem for output reshape']
    #allocation1 [shape = 'u8[4096]{0}', space=vmem, size = 0x1000, scoped, tag = 'scoped mem for input reshape']
    %s3 = sshllo.u32 0, 4
    %v4 = vld [vmem:[%s0] sm:%s3]
    %5 = vst [vmem:[#allocation1] sm:%s3] %v4
    %v6 = vld [vmem:[#allocation1] sm:$0x1]
    %vm7 = vcmask 15360
    %8 = vst.msk [vmem:[#allocation0] sm:$0x1] %vm7, %v6
    %s9 = scalar_lea.vmem [#allocation1], 3
    %v10 = vld [vmem:[%s9] sm:$0x1]
    %11 = vrot.lane.b32.xlu0 %v10, 6
    %v12 = vpop.permute.xlu0 %11
    %vm13 = vcmask 64560
    %14 = vst.msk [vmem:[#allocation0] sm:$0x1] %vm13, %v12
    %s15 = scalar_lea.vmem [#allocation1], 2
    %v16 = vld [vmem:[%s15] sm:$0x1]
    %17 = vrot.lane.b32.xlu0 %v16, 4
    %v18 = vpop.permute.xlu0 %17
    %vm19 = vcmask 48160
    %20 = vst.msk [vmem:[#allocation0] sm:$0x1] %vm19, %v18
    %s21 = scalar_lea.vmem [#allocation1], 1
    %v22 = vld [vmem:[%s21] sm:$0x1]
    %23 = vrot.lane.b32.xlu0 %v22, 2
    %v24 = vpop.permute.xlu0 %23
    %vm25 = vcmask 31760
    %26 = vst.msk [vmem:[#allocation0] sm:$0x1] %vm25, %v24
    %s28 = sshllo.u32 0, 1
    %v30 = vld [vmem:[#allocation0] sm:%s28]
    %s31 = sshllo.u32 0, 1
    %32 = vst [vmem:[%s1] sm:%s31] %v30

// kernel: tile.17
$region0: #{tile.17}
  %s0 = inlined_call_operand.vmem [shape: f32[8,16,16], index: 0, kind: input, shape index: {}]
  %s1 = inlined_call_operand.vmem [shape: f32[8,256], index: 1, kind: output, shape index: {}]
  %v2 = vld [vmem:[%s0] ss:$8 sm:$0xf]
  %v3 = vld [vmem:[%s0] ss:$8 sm:$0xf0]
  %vm4 = vcmask 1047556
  %v5 = vsel %vm4, %v3, %v2
  %vm6 = vcmask 130048
  %7 = vst.msk [vmem:[%s1] ss:$8 sm:$0x3] %vm6, %v5
  %s8 = scalar_lea.vmem %s1, 4294967281
  %9 = vst.msk [vmem:[%s8] ss:$8 sm:$0xc] %vm6, %v5
  %s10 = scalar_lea.vmem %s1, 4294967266
  %11 = vst.msk [vmem:[%s10] ss:$8 sm:$0x30] %vm6, %v5
  %s12 = scalar_lea.vmem %s1, 4294967251
  %13 = vst.msk [vmem:[%s12] ss:$8 sm:$0xc0] %vm6, %v5
  %s14 = scalar_lea.vmem %s0, 64
  %v15 = vld [vmem:[%s14] ss:$8 sm:$0xf]
  %s16 = scalar_lea.vmem %s0, 64
  %v17 = vld [vmem:[%s16] ss:$8 sm:$0xf0]
  %vm18 = vcmask 1047556
  %v19 = vsel %vm18, %v17, %v15
  %vm20 = vcmask 130048
  %s21 = scalar_lea.vmem %s1, 4
  %22 = vst.msk [vmem:[%s21] ss:$8 sm:$0x3] %vm20, %v19
  %s23 = scalar_lea.vmem %s1, 4294967285
  %24 = vst.msk [vmem:[%s23] ss:$8 sm:$0xc] %vm20, %v19
  %s25 = scalar_lea.vmem %s1, 4294967270
  %26 = vst.msk [vmem:[%s25] ss:$8 sm:$0x30] %vm20, %v19
  %s27 = scalar_lea.vmem %s1, 4294967255
  %28 = vst.msk [vmem:[%s27] ss:$8 sm:$0xc0] %vm20, %v19
  %s29 = scalar_lea.vmem %s0, 7
  %s30 = smov 3
  %v31 = vld [vmem:[%s29] ss:$16 sm:%s30]
  %s32 = scalar_lea.vmem %s0, 7
  %s33 = smov 12
  %v34 = vld [vmem:[%s32] ss:$16 sm:%s33]
  %vm35 = vcmask 1043458
  %v36 = vsel %vm35, %v34, %v31
  %s37 = scalar_lea.vmem %s0, 7
  %s38 = smov 48
  %v39 = vld [vmem:[%s37] ss:$16 sm:%s38]
  %vm40 = vcmask 1045508
  %v41 = vsel %vm40, %v39, %v36
  %s42 = scalar_lea.vmem %s0, 7
  %s43 = smov 192
  %v44 = vld [vmem:[%s42] ss:$16 sm:%s43]
  %vm45 = vcmask 1047558
  %v46 = vsel %vm45, %v44, %v41
  %47 = vrot.lane.b32.xlu0 %v46, 112
  %v48 = vpop.permute.xlu0 %47
  %vm49 = vcmask 1048448
  %50 = vst.msk [vmem:[%s1] sm:$0xff] %vm49, %v48
  %s51 = scalar_lea.vmem %s0, 15
  %s52 = smov 3
  %v53 = vld [vmem:[%s51] ss:$16 sm:%s52]
  %s54 = scalar_lea.vmem %s0, 15
  %s55 = smov 12
  %v56 = vld [vmem:[%s54] ss:$16 sm:%s55]
  %vm57 = vcmask 1043458
  %v58 = vsel %vm57, %v56, %v53
  %s59 = scalar_lea.vmem %s0, 15
  %s60 = smov 48
  %v61 = vld [vmem:[%s59] ss:$16 sm:%s60]
  %vm62 = vcmask 1045508
  %v63 = vsel %vm62, %v61, %v58
  %s64 = scalar_lea.vmem %s0, 15
  %s65 = smov 192
  %v66 = vld [vmem:[%s64] ss:$16 sm:%s65]
  %vm67 = vcmask 1047558
  %v68 = vsel %vm67, %v66, %v63
  %69 = vrot.lane.b32.xlu0 %v68, 112
  %v70 = vpop.permute.xlu0 %69
  %vm71 = vcmask 1048448
  %s72 = scalar_lea.vmem %s1, 8
  %73 = vst.msk [vmem:[%s72] sm:$0xff] %vm71, %v70
  %s74 = scalar_lea.vmem %s0, 6
  %s75 = smov 3
  %v76 = vld [vmem:[%s74] ss:$16 sm:%s75]
  %s77 = scalar_lea.vmem %s0, 6
  %s78 = smov 12
  %v79 = vld [vmem:[%s77] ss:$16 sm:%s78]
  %vm80 = vcmask 1043458
  %v81 = vsel %vm80, %v79, %v76
  %s82 = scalar_lea.vmem %s0, 6
  %s83 = smov 48
  %v84 = vld [vmem:[%s82] ss:$16 sm:%s83]
  %vm85 = vcmask 1045508
  %v86 = vsel %vm85, %v84, %v81
  %s87 = scalar_lea.vmem %s0, 6
  %s88 = smov 192
  %v89 = vld [vmem:[%s87] ss:$16 sm:%s88]
  %vm90 = vcmask 1047558
  %v91 = vsel %vm90, %v89, %v86
  %92 = vrot.lane.b32.xlu0 %v91, 96
  %v93 = vpop.permute.xlu0 %92
  %vm94 = vcmask 917248
  %95 = vst.msk [vmem:[%s1] sm:$0xff] %vm94, %v93
  %s96 = scalar_lea.vmem %s0, 14
  %s97 = smov 3
  %v98 = vld [vmem:[%s96] ss:$16 sm:%s97]
  %s99 = scalar_lea.vmem %s0, 14
  %s100 = smov 12
  %v101 = vld [vmem:[%s99] ss:$16 sm:%s100]
  %vm102 = vcmask 1043458
  %v103 = vsel %vm102, %v101, %v98
  %s104 = scalar_lea.vmem %s0, 14
  %s105 = smov 48
  %v106 = vld [vmem:[%s104] ss:$16 sm:%s105]
  %vm107 = vcmask 1045508
  %v108 = vsel %vm107, %v106, %v103
  %s109 = scalar_lea.vmem %s0, 14
  %s110 = smov 192
  %v111 = vld [vmem:[%s109] ss:$16 sm:%s110]
  %vm112 = vcmask 1047558
  %v113 = vsel %vm112, %v111, %v108
  %114 = vrot.lane.b32.xlu0 %v113, 96
  %v115 = vpop.permute.xlu0 %114
  %vm116 = vcmask 917248
  %s117 = scalar_lea.vmem %s1, 8
  %118 = vst.msk [vmem:[%s117] sm:$0xff] %vm116, %v115
  %s119 = scalar_lea.vmem %s0, 5
  %s120 = smov 3
  %v121 = vld [vmem:[%s119] ss:$16 sm:%s120]
  %s122 = scalar_lea.vmem %s0, 5
  %s123 = smov 12
  %v124 = vld [vmem:[%s122] ss:$16 sm:%s123]
  %vm125 = vcmask 1043458
  %v126 = vsel %vm125, %v124, %v121
  %s127 = scalar_lea.vmem %s0, 5
  %s128 = smov 48
  %v129 = vld [vmem:[%s127] ss:$16 sm:%s128]
  %vm130 = vcmask 1045508
  %v131 = vsel %vm130, %v129, %v126
  %s132 = scalar_lea.vmem %s0, 5
  %s133 = smov 192
  %v134 = vld [vmem:[%s132] ss:$16 sm:%s133]
  %vm135 = vcmask 1047558
  %v136 = vsel %vm135, %v134, %v131
  %137 = vrot.lane.b32.xlu0 %v136, 80
  %v138 = vpop.permute.xlu0 %137
  %vm139 = vcmask 786048
  %140 = vst.msk [vmem:[%s1] sm:$0xff] %vm139, %v138
  %s141 = scalar_lea.vmem %s0, 13
  %s142 = smov 3
  %v143 = vld [vmem:[%s141] ss:$16 sm:%s142]
  %s144 = scalar_lea.vmem %s0, 13
  %s145 = smov 12
  %v146 = vld [vmem:[%s144] ss:$16 sm:%s145]
  %vm147 = vcmask 1043458
  %v148 = vsel %vm147, %v146, %v143
  %s149 = scalar_lea.vmem %s0, 13
  %s150 = smov 48
  %v151 = vld [vmem:[%s149] ss:$16 sm:%s150]
  %vm152 = vcmask 1045508
  %v153 = vsel %vm152, %v151, %v148
  %s154 = scalar_lea.vmem %s0, 13
  %s155 = smov 192
  %v156 = vld [vmem:[%s154] ss:$16 sm:%s155]
  %vm157 = vcmask 1047558
  %v158 = vsel %vm157, %v156, %v153
  %159 = vrot.lane.b32.xlu0 %v158, 80
  %v160 = vpop.permute.xlu0 %159
  %vm161 = vcmask 786048
  %s162 = scalar_lea.vmem %s1, 8
  %163 = vst.msk [vmem:[%s162] sm:$0xff] %vm161, %v160
  %s164 = scalar_lea.vmem %s0, 4
  %s165 = smov 3
  %v166 = vld [vmem:[%s164] ss:$16 sm:%s165]
  %s167 = scalar_lea.vmem %s0, 4
  %s168 = smov 12
  %v169 = vld [vmem:[%s167] ss:$16 sm:%s168]
  %vm170 = vcmask 1043458
  %v171 = vsel %vm170, %v169, %v166
  %s172 = scalar_lea.vmem %s0, 4
  %s173 = smov 48
  %v174 = vld [vmem:[%s172] ss:$16 sm:%s173]
  %vm175 = vcmask 1045508
  %v176 = vsel %vm175, %v174, %v171
  %s177 = scalar_lea.vmem %s0, 4
  %s178 = smov 192
  %v179 = vld [vmem:[%s177] ss:$16 sm:%s178]
  %vm180 = vcmask 1047558
  %v181 = vsel %vm180, %v179, %v176
  %182 = vrot.lane.b32.xlu0 %v181, 64
  %v183 = vpop.permute.xlu0 %182
  %vm184 = vcmask 654848
  %185 = vst.msk [vmem:[%s1] sm:$0xff] %vm184, %v183
  %s186 = scalar_lea.vmem %s0, 12
  %s187 = smov 3
  %v188 = vld [vmem:[%s186] ss:$16 sm:%s187]
  %s189 = scalar_lea.vmem %s0, 12
  %s190 = smov 12
  %v191 = vld [vmem:[%s189] ss:$16 sm:%s190]
  %vm192 = vcmask 1043458
  %v193 = vsel %vm192, %v191, %v188
  %s194 = scalar_lea.vmem %s0, 12
  %s195 = smov 48
  %v196 = vld [vmem:[%s194] ss:$16 sm:%s195]
  %vm197 = vcmask 1045508
  %v198 = vsel %vm197, %v196, %v193
  %s199 = scalar_lea.vmem %s0, 12
  %s200 = smov 192
  %v201 = vld [vmem:[%s199] ss:$16 sm:%s200]
  %vm202 = vcmask 1047558
  %v203 = vsel %vm202, %v201, %v198
  %204 = vrot.lane.b32.xlu0 %v203, 64
  %v205 = vpop.permute.xlu0 %204
  %vm206 = vcmask 654848
  %s207 = scalar_lea.vmem %s1, 8
  %208 = vst.msk [vmem:[%s207] sm:$0xff] %vm206, %v205
  %s209 = scalar_lea.vmem %s0, 3
  %s210 = smov 3
  %v211 = vld [vmem:[%s209] ss:$16 sm:%s210]
  %s212 = scalar_lea.vmem %s0, 3
  %s213 = smov 12
  %v214 = vld [vmem:[%s212] ss:$16 sm:%s213]
  %vm215 = vcmask 1043458
  %v216 = vsel %vm215, %v214, %v211
  %s217 = scalar_lea.vmem %s0, 3
  %s218 = smov 48
  %v219 = vld [vmem:[%s217] ss:$16 sm:%s218]
  %vm220 = vcmask 1045508
  %v221 = vsel %vm220, %v219, %v216
  %s222 = scalar_lea.vmem %s0, 3
  %s223 = smov 192
  %v224 = vld [vmem:[%s222] ss:$16 sm:%s223]
  %vm225 = vcmask 1047558
  %v226 = vsel %vm225, %v224, %v221
  %227 = vrot.lane.b32.xlu0 %v226, 48
  %v228 = vpop.permute.xlu0 %227
  %vm229 = vcmask 523648
  %230 = vst.msk [vmem:[%s1] sm:$0xff] %vm229, %v228
  %s231 = scalar_lea.vmem %s0, 11
  %s232 = smov 3
  %v233 = vld [vmem:[%s231] ss:$16 sm:%s232]
  %s234 = scalar_lea.vmem %s0, 11
  %s235 = smov 12
  %v236 = vld [vmem:[%s234] ss:$16 sm:%s235]
  %vm237 = vcmask 1043458
  %v238 = vsel %vm237, %v236, %v233
  %s239 = scalar_lea.vmem %s0, 11
  %s240 = smov 48
  %v241 = vld [vmem:[%s239] ss:$16 sm:%s240]
  %vm242 = vcmask 1045508
  %v243 = vsel %vm242, %v241, %v238
  %s244 = scalar_lea.vmem %s0, 11
  %s245 = smov 192
  %v246 = vld [vmem:[%s244] ss:$16 sm:%s245]
  %vm247 = vcmask 1047558
  %v248 = vsel %vm247, %v246, %v243
  %249 = vrot.lane.b32.xlu0 %v248, 48
  %v250 = vpop.permute.xlu0 %249
  %vm251 = vcmask 523648
  %s252 = scalar_lea.vmem %s1, 8
  %253 = vst.msk [vmem:[%s252] sm:$0xff] %vm251, %v250
  %s254 = scalar_lea.vmem %s0, 2
  %s255 = smov 3
  %v256 = vld [vmem:[%s254] ss:$16 sm:%s255]
  %s257 = scalar_lea.vmem %s0, 2
  %s258 = smov 12
  %v259 = vld [vmem:[%s257] ss:$16 sm:%s258]
  %vm260 = vcmask 1043458
  %v261 = vsel %vm260, %v259, %v256
  %s262 = scalar_lea.vmem %s0, 2
  %s263 = smov 48
  %v264 = vld [vmem:[%s262] ss:$16 sm:%s263]
  %vm265 = vcmask 1045508
  %v266 = vsel %vm265, %v264, %v261
  %s267 = scalar_lea.vmem %s0, 2
  %s268 = smov 192
  %v269 = vld [vmem:[%s267] ss:$16 sm:%s268]
  %vm270 = vcmask 1047558
  %v271 = vsel %vm270, %v269, %v266
  %272 = vrot.lane.b32.xlu0 %v271, 32
  %v273 = vpop.permute.xlu0 %272
  %vm274 = vcmask 392448
  %275 = vst.msk [vmem:[%s1] sm:$0xff] %vm274, %v273
  %s276 = scalar_lea.vmem %s0, 10
  %s277 = smov 3
  %v278 = vld [vmem:[%s276] ss:$16 sm:%s277]
  %s279 = scalar_lea.vmem %s0, 10
  %s280 = smov 12
  %v281 = vld [vmem:[%s279] ss:$16 sm:%s280]
  %vm282 = vcmask 1043458
  %v283 = vsel %vm282, %v281, %v278
  %s284 = scalar_lea.vmem %s0, 10
  %s285 = smov 48
  %v286 = vld [vmem:[%s284] ss:$16 sm:%s285]
  %vm287 = vcmask 1045508
  %v288 = vsel %vm287, %v286, %v283
  %s289 = scalar_lea.vmem %s0, 10
  %s290 = smov 192
  %v291 = vld [vmem:[%s289] ss:$16 sm:%s290]
  %vm292 = vcmask 1047558
  %v293 = vsel %vm292, %v291, %v288
  %294 = vrot.lane.b32.xlu0 %v293, 32
  %v295 = vpop.permute.xlu0 %294
  %vm296 = vcmask 392448
  %s297 = scalar_lea.vmem %s1, 8
  %298 = vst.msk [vmem:[%s297] sm:$0xff] %vm296, %v295
  %s299 = scalar_lea.vmem %s0, 1
  %s300 = smov 3
  %v301 = vld [vmem:[%s299] ss:$16 sm:%s300]
  %s302 = scalar_lea.vmem %s0, 1
  %s303 = smov 12
  %v304 = vld [vmem:[%s302] ss:$16 sm:%s303]
  %vm305 = vcmask 1043458
  %v306 = vsel %vm305, %v304, %v301
  %s307 = scalar_lea.vmem %s0, 1
  %s308 = smov 48
  %v309 = vld [vmem:[%s307] ss:$16 sm:%s308]
  %vm310 = vcmask 1045508
  %v311 = vsel %vm310, %v309, %v306
  %s312 = scalar_lea.vmem %s0, 1
  %s313 = smov 192
  %v314 = vld [vmem:[%s312] ss:$16 sm:%s313]
  %vm315 = vcmask 1047558
  %v316 = vsel %vm315, %v314, %v311
  %317 = vrot.lane.b32.xlu0 %v316, 16
  %v318 = vpop.permute.xlu0 %317
  %vm319 = vcmask 261248
  %320 = vst.msk [vmem:[%s1] sm:$0xff] %vm319, %v318
  %s321 = scalar_lea.vmem %s0, 9
  %s322 = smov 3
  %v323 = vld [vmem:[%s321] ss:$16 sm:%s322]
  %s324 = scalar_lea.vmem %s0, 9
  %s325 = smov 12
  %v326 = vld [vmem:[%s324] ss:$16 sm:%s325]
  %vm327 = vcmask 1043458
  %v328 = vsel %vm327, %v326, %v323
  %s329 = scalar_lea.vmem %s0, 9
  %s330 = smov 48
  %v331 = vld [vmem:[%s329] ss:$16 sm:%s330]
  %vm332 = vcmask 1045508
  %v333 = vsel %vm332, %v331, %v328
  %s334 = scalar_lea.vmem %s0, 9
  %s335 = smov 192
  %v336 = vld [vmem:[%s334] ss:$16 sm:%s335]
  %vm337 = vcmask 1047558
  %v338 = vsel %vm337, %v336, %v333
  %339 = vrot.lane.b32.xlu0 %v338, 16
  %v340 = vpop.permute.xlu0 %339
  %vm341 = vcmask 261248
  %s342 = scalar_lea.vmem %s1, 8
  %343 = vst.msk [vmem:[%s342] sm:$0xff] %vm341, %v340

// kernel: latent_space_model_based_forward.1
$region0: #{latent_space_model_based_forward.1}
  #allocation0 [shape = 'u32[]', space=smem, size = 0x4, offset = 0x4, fixed_abs, tag = 'smem constant byte address 0x4 - core index']
  #allocation1 [shape = 'u32[144,128]{1,0:T(1,128)}', space=vmem, size = 0x12000, scoped, tag = 'internal scratch']
  %s0 = inlined_call_operand.vmem [shape: f32[8,64], index: 0, kind: input, shape index: {}]
  %s1 = inlined_call_operand.vmem [shape: f32[8,256], index: 1, kind: input, shape index: {}]
  %s2 = inlined_call_operand.vmem [shape: bf16[64,256], index: 2, kind: input, shape index: {}]
  %s3 = inlined_call_operand.vmem [shape: f32[1,256], index: 3, kind: input, shape index: {}]
  %s4 = inlined_call_operand.vmem [shape: bf16[256,256], index: 4, kind: input, shape index: {}]
  %s5 = inlined_call_operand.vmem [shape: f32[1,256], index: 5, kind: input, shape index: {}]
  %s6 = inlined_call_operand.vmem [shape: bf16[256,128], index: 6, kind: input, shape index: {}]
  %s7 = inlined_call_operand.vmem [shape: f32[1,128], index: 7, kind: input, shape index: {}]
  %s8 = inlined_call_operand.vmem [shape: bf16[128,256], index: 8, kind: input, shape index: {}]
  %s9 = inlined_call_operand.vmem [shape: f32[1,256], index: 9, kind: input, shape index: {}]
  %s10 = inlined_call_operand.vmem [shape: bf16[64,256], index: 10, kind: input, shape index: {}]
  %s11 = inlined_call_operand.vmem [shape: f32[1,256], index: 11, kind: input, shape index: {}]
  %s12 = inlined_call_operand.vmem [shape: f32[8,64], index: 12, kind: output, shape index: {}]
  %s13 = sld [smem:[#allocation0]]
  $region58: #{latent_space_model_based_forward.1} parent=0
    _
  %s15 = ssub.s32 1, %s13
  %s16 = scalar_select 0, %s15, %s13
  // Predicated region
  $region2: #{latent_space_model_based_forward.1} parent=0 // pred_check
    _
  $region3: #{latent_space_model_based_forward.1} parent=0 // pred_check_branch
    %18 = sbr.rel (0) target = $region5
  $region4: #{latent_space_model_based_forward.1} parent=0 // pred_region
    _
  $region5: #{latent_space_model_based_forward.1} parent=0 // pred_fallthru
    _
  // Predicated region
  $region6: #{latent_space_model_based_forward.1} parent=0 // pred_check
    _
  $region7: #{latent_space_model_based_forward.1} parent=0 // pred_check_branch
    %20 = sbr.rel (0) target = $region9
  $region8: #{latent_space_model_based_forward.1} parent=0 // pred_region
    _
  $region9: #{latent_space_model_based_forward.1} parent=0 // pred_fallthru
    _
  // Predicated region
  $region10: #{latent_space_model_based_forward.1} parent=0 // pred_check
    _
  $region11: #{latent_space_model_based_forward.1} parent=0 // pred_check_branch
    %22 = sbr.rel (0) target = $region13
  $region12: #{latent_space_model_based_forward.1} parent=0 // pred_region
    _
  $region13: #{latent_space_model_based_forward.1} parent=0 // pred_fallthru
    _
  // Predicated region
  $region14: #{latent_space_model_based_forward.1} parent=0 // pred_check
    _
  $region15: #{latent_space_model_based_forward.1} parent=0 // pred_check_branch
    %24 = sbr.rel (0) target = $region17
  $region16: #{latent_space_model_based_forward.1} parent=0 // pred_region
    _
  $region17: #{latent_space_model_based_forward.1} parent=0 // pred_fallthru
    _
  // Predicated region
  $region18: #{latent_space_model_based_forward.1} parent=0 // pred_check
    _
  $region19: #{latent_space_model_based_forward.1} parent=0 // pred_check_branch
    %26 = sbr.rel (0) target = $region21
  $region20: #{latent_space_model_based_forward.1} parent=0 // pred_region
    _
  $region21: #{latent_space_model_based_forward.1} parent=0 // pred_fallthru
    _
  // Predicated region
  $region22: #{latent_space_model_based_forward.1} parent=0 // pred_check
    _
  $region23: #{latent_space_model_based_forward.1} parent=0 // pred_check_branch
    %28 = sbr.rel (0) target = $region25
  $region24: #{latent_space_model_based_forward.1} parent=0 // pred_region
    _
  $region25: #{latent_space_model_based_forward.1} parent=0 // pred_fallthru
    _
  // Predicated region
  $region26: #{latent_space_model_based_forward.1} parent=0 // pred_check
    _
  $region27: #{latent_space_model_based_forward.1} parent=0 // pred_check_branch
    %30 = sbr.rel (0) target = $region29
  $region28: #{latent_space_model_based_forward.1} parent=0 // pred_region
    _
  $region29: #{latent_space_model_based_forward.1} parent=0 // pred_fallthru
    _
  // Predicated region
  $region30: #{latent_space_model_based_forward.1} parent=0 // pred_check
    _
  $region31: #{latent_space_model_based_forward.1} parent=0 // pred_check_branch
    %32 = sbr.rel (0) target = $region33
  $region32: #{latent_space_model_based_forward.1} parent=0 // pred_region
    _
  $region33: #{latent_space_model_based_forward.1} parent=0 // pred_fallthru
    _
  // Predicated region
  $region34: #{latent_space_model_based_forward.1} parent=0 // pred_check
    _
  $region35: #{latent_space_model_based_forward.1} parent=0 // pred_check_branch
    %34 = sbr.rel (0) target = $region37
  $region36: #{latent_space_model_based_forward.1} parent=0 // pred_region
    _
  $region37: #{latent_space_model_based_forward.1} parent=0 // pred_fallthru
    _
  // Predicated region
  $region38: #{latent_space_model_based_forward.1} parent=0 // pred_check
    _
  $region39: #{latent_space_model_based_forward.1} parent=0 // pred_check_branch
    %36 = sbr.rel (0) target = $region41
  $region40: #{latent_space_model_based_forward.1} parent=0 // pred_region
    _
  $region41: #{latent_space_model_based_forward.1} parent=0 // pred_fallthru
    _
  // Predicated region
  $region42: #{latent_space_model_based_forward.1} parent=0 // pred_check
    _
  $region43: #{latent_space_model_based_forward.1} parent=0 // pred_check_branch
    %38 = sbr.rel (0) target = $region45
  $region44: #{latent_space_model_based_forward.1} parent=0 // pred_region
    _
  $region45: #{latent_space_model_based_forward.1} parent=0 // pred_fallthru
    _
  // Predicated region
  $region46: #{latent_space_model_based_forward.1} parent=0 // pred_check
    _
  $region47: #{latent_space_model_based_forward.1} parent=0 // pred_check_branch
    %40 = sbr.rel (0) target = $region49
  $region48: #{latent_space_model_based_forward.1} parent=0 // pred_region
    _
  $region49: #{latent_space_model_based_forward.1} parent=0 // pred_fallthru
    _
  %v42 = vld [vmem:[%s0] sm:$0xff]
  %v43 = vpack.c.bf16 %v42, %v42
  %v44 = vld [vmem:[%s2] sm:$0xff]
  %v45 = vld [vmem:[%s2 + $0x8] sm:$0xff]
  %v46 = vld [vmem:[%s2 + $0x10] sm:$0xff]
  %v47 = vld [vmem:[%s2 + $0x18] sm:$0xff]
  %v48 = vld [vmem:[%s2 + $0x20] sm:$0xff]
  %v49 = vld [vmem:[%s2 + $0x28] sm:$0xff]
  %v50 = vld [vmem:[%s2 + $0x30] sm:$0xff]
  %v51 = vld [vmem:[%s2 + $0x38] sm:$0xff]
  %v52 = vld [vmem:[%s3] sm:$0x3]
  %v54 = vlaneseq
  %v55 = vshrl.u32 %v54, 7
  %v56 = vsub.s32 0, %v55
  %v57 = vrot.slane %v52, %v56
  %v58 = vlaneseq
  %v59 = vshrl.u32 %v58, 7
  %v60 = vsub.s32 1, %v59
  %v61 = vrot.slane %v52, %v60
  %v72 = vunpack.c.l.b16 %v44
  %v73 = vunpack.c.h.b16 %v44
  %v74 = vunpack.c.l.b16 %v45
  %v75 = vunpack.c.h.b16 %v45
  %v76 = vunpack.c.l.b16 %v46
  %v77 = vunpack.c.h.b16 %v46
  %v78 = vunpack.c.l.b16 %v47
  %v79 = vunpack.c.h.b16 %v47
  %v80 = vunpack.c.l.b16 %v48
  %v81 = vunpack.c.h.b16 %v48
  %v82 = vunpack.c.l.b16 %v49
  %v83 = vunpack.c.h.b16 %v49
  %v84 = vunpack.c.l.b16 %v50
  %v85 = vunpack.c.h.b16 %v50
  %v86 = vunpack.c.l.b16 %v51
  %v87 = vunpack.c.h.b16 %v51
  %v88 = vpack.c.b16 %v74, %v72
  %v89 = vpack.c.b16 %v75, %v73
  %v90 = vpack.c.b16 %v78, %v76
  %v91 = vpack.c.b16 %v79, %v77
  %v92 = vpack.c.b16 %v82, %v80
  %v93 = vpack.c.b16 %v83, %v81
  %v94 = vpack.c.b16 %v86, %v84
  %v95 = vpack.c.b16 %v87, %v85
  %vm104 = vcmask 523264
  %v106 = vsel %vm104, %v43, 0
  %108 = vmatprep.subr.bf16.mxu0 %v89
  %109 = vmatpush1.bf16.msra.mxu0 %v88
  %110 = vmatprep.subr.bf16.mxu0 %v91
  %111 = vmatpush1.bf16.msra.mxu0 %v90
  %112 = vmatprep.subr.bf16.mxu0 %v93
  %113 = vmatpush1.bf16.msra.mxu0 %v92
  %114 = vmatprep.subr.bf16.mxu0 %v95
  %115 = vmatpush1.bf16.msra.mxu0 %v94
  %116 = vmatprep.subr.bf16.mxu0 0
  %117 = vmatpush1.bf16.msra.mxu0 0
  %118 = vmatprep.subr.bf16.mxu0 0
  %119 = vmatpush1.bf16.msra.mxu0 0
  %120 = vmatprep.subr.bf16.mxu0 0
  %121 = vmatpush1.bf16.msra.mxu0 0
  %122 = vmatprep.subr.bf16.mxu0 0
  %123 = vmatpush1.bf16.msra.mxu0 0
  %124 = vmatprep.subr.bf16.mxu0 0
  %125 = vmatpush1.bf16.msra.mxu0 0
  %126 = vmatprep.subr.bf16.mxu0 0
  %127 = vmatpush1.bf16.msra.mxu0 0
  %128 = vmatprep.subr.bf16.mxu0 0
  %129 = vmatpush1.bf16.msra.mxu0 0
  %130 = vmatprep.subr.bf16.mxu0 0
  %131 = vmatpush1.bf16.msra.mxu0 0
  %132 = vmatprep.subr.bf16.mxu0 0
  %133 = vmatpush1.bf16.msra.mxu0 0
  %134 = vmatprep.subr.bf16.mxu0 0
  %135 = vmatpush1.bf16.msra.mxu0 0
  %136 = vmatprep.subr.bf16.mxu0 0
  %137 = vmatpush1.bf16.msra.mxu0 0
  %138 = vmatprep.subr.bf16.mxu0 0
  %139 = vmatpush1.bf16.msra.mxu0 0
  %140 = vmatprep.mubr.bf16.mxu0 0
  %141 = vmatmul.mubr.bf16.gmra.mrb[0].mxu0 %v106
  %v142 = vpop.f32.mrb[0].mxu0
  %v143 = vadd.f32 %v57, %v142
  %v144 = vpop.f32.mrb[0].mxu0
  %v145 = vadd.f32 %v61, %v144
  %v146 = vpop.f32.mrb[0].mxu0
  %v147 = vpop.f32.mrb[0].mxu0
  %148 = vdwg.mxu0
  %v149 = vmax.f32 %v143, 0.0
  %v150 = vmax.f32 %v145, 0.0
  %v151 = vld [vmem:[%s1] sm:$0xff]
  %v152 = vld [vmem:[%s1 + $0x8] sm:$0xff]
  %v153 = vld [vmem:[%s5] sm:$0x3]
  %v154 = vld [vmem:[%s7] sm:$0x1]
  %v155 = vld [vmem:[%s9] sm:$0x3]
  %v156 = vld [vmem:[%s11] sm:$0x3]
  %v157 = vpack.c.bf16 %v149, %v149
  %v158 = vpack.c.bf16 %v150, %v150
  %v159 = vld [vmem:[%s4] sm:$0xff]
  %v160 = vld [vmem:[%s4 + $0x8] sm:$0xff]
  %v161 = vld [vmem:[%s4 + $0x10] sm:$0xff]
  %v162 = vld [vmem:[%s4 + $0x18] sm:$0xff]
  %v163 = vld [vmem:[%s4 + $0x20] sm:$0xff]
  %v164 = vld [vmem:[%s4 + $0x28] sm:$0xff]
  %v165 = vld [vmem:[%s4 + $0x30] sm:$0xff]
  %v166 = vld [vmem:[%s4 + $0x38] sm:$0xff]
  %v167 = vld [vmem:[%s4 + $0x40] sm:$0xff]
  %v168 = vld [vmem:[%s4 + $0x48] sm:$0xff]
  %v169 = vld [vmem:[%s4 + $0x50] sm:$0xff]
  %v170 = vld [vmem:[%s4 + $0x58] sm:$0xff]
  %v171 = vld [vmem:[%s4 + $0x60] sm:$0xff]
  %v172 = vld [vmem:[%s4 + $0x68] sm:$0xff]
  %v173 = vld [vmem:[%s4 + $0x70] sm:$0xff]
  %v174 = vld [vmem:[%s4 + $0x78] sm:$0xff]
  %v175 = vld [vmem:[%s4 + $0x80] sm:$0xff]
  %v176 = vld [vmem:[%s4 + $0x88] sm:$0xff]
  %v177 = vld [vmem:[%s4 + $0x90] sm:$0xff]
  %v178 = vld [vmem:[%s4 + $0x98] sm:$0xff]
  %v179 = vld [vmem:[%s4 + $0xa0] sm:$0xff]
  %v180 = vld [vmem:[%s4 + $0xa8] sm:$0xff]
  %v181 = vld [vmem:[%s4 + $0xb0] sm:$0xff]
  %v182 = vld [vmem:[%s4 + $0xb8] sm:$0xff]
  %v183 = vld [vmem:[%s4 + $0xc0] sm:$0xff]
  %v184 = vld [vmem:[%s4 + $0xc8] sm:$0xff]
  %v185 = vld [vmem:[%s4 + $0xd0] sm:$0xff]
  %v186 = vld [vmem:[%s4 + $0xd8] sm:$0xff]
  %v187 = vld [vmem:[%s4 + $0xe0] sm:$0xff]
  %v188 = vld [vmem:[%s4 + $0xe8] sm:$0xff]
  %v189 = vld [vmem:[%s4 + $0xf0] sm:$0xff]
  %v190 = vld [vmem:[%s4 + $0xf8] sm:$0xff]
  %v223 = vunpack.c.l.b16 %v159
  %v224 = vunpack.c.h.b16 %v159
  %v225 = vunpack.c.l.b16 %v160
  %v226 = vunpack.c.h.b16 %v160
  %v227 = vunpack.c.l.b16 %v161
  %v228 = vunpack.c.h.b16 %v161
  %v229 = vunpack.c.l.b16 %v162
  %v230 = vunpack.c.h.b16 %v162
  %v231 = vunpack.c.l.b16 %v163
  %v232 = vunpack.c.h.b16 %v163
  %v233 = vunpack.c.l.b16 %v164
  %v234 = vunpack.c.h.b16 %v164
  %v235 = vunpack.c.l.b16 %v165
  %v236 = vunpack.c.h.b16 %v165
  %v237 = vunpack.c.l.b16 %v166
  %v238 = vunpack.c.h.b16 %v166
  %v239 = vunpack.c.l.b16 %v167
  %v240 = vunpack.c.h.b16 %v167
  %v241 = vunpack.c.l.b16 %v168
  %v242 = vunpack.c.h.b16 %v168
  %v243 = vunpack.c.l.b16 %v169
  %v244 = vunpack.c.h.b16 %v169
  %v245 = vunpack.c.l.b16 %v170
  %v246 = vunpack.c.h.b16 %v170
  %v247 = vunpack.c.l.b16 %v171
  %v248 = vunpack.c.h.b16 %v171
  %v249 = vunpack.c.l.b16 %v172
  %v250 = vunpack.c.h.b16 %v172
  %v251 = vunpack.c.l.b16 %v173
  %v252 = vunpack.c.h.b16 %v173
  %v253 = vunpack.c.l.b16 %v174
  %v254 = vunpack.c.h.b16 %v174
  %v255 = vunpack.c.l.b16 %v175
  %v256 = vunpack.c.h.b16 %v175
  %v257 = vunpack.c.l.b16 %v176
  %v258 = vunpack.c.h.b16 %v176
  %v259 = vunpack.c.l.b16 %v177
  %v260 = vunpack.c.h.b16 %v177
  %v261 = vunpack.c.l.b16 %v178
  %v262 = vunpack.c.h.b16 %v178
  %v263 = vunpack.c.l.b16 %v179
  %v264 = vunpack.c.h.b16 %v179
  %v265 = vunpack.c.l.b16 %v180
  %v266 = vunpack.c.h.b16 %v180
  %v267 = vunpack.c.l.b16 %v181
  %v268 = vunpack.c.h.b16 %v181
  %v269 = vunpack.c.l.b16 %v182
  %v270 = vunpack.c.h.b16 %v182
  %v271 = vunpack.c.l.b16 %v183
  %v272 = vunpack.c.h.b16 %v183
  %v273 = vunpack.c.l.b16 %v184
  %v274 = vunpack.c.h.b16 %v184
  %v275 = vunpack.c.l.b16 %v185
  %v276 = vunpack.c.h.b16 %v185
  %v277 = vunpack.c.l.b16 %v186
  %v278 = vunpack.c.h.b16 %v186
  %v279 = vunpack.c.l.b16 %v187
  %v280 = vunpack.c.h.b16 %v187
  %v281 = vunpack.c.l.b16 %v188
  %v282 = vunpack.c.h.b16 %v188
  %v283 = vunpack.c.l.b16 %v189
  %v284 = vunpack.c.h.b16 %v189
  %v285 = vunpack.c.l.b16 %v190
  %v286 = vunpack.c.h.b16 %v190
  %v287 = vpack.c.b16 %v225, %v223
  %v288 = vpack.c.b16 %v226, %v224
  %v289 = vpack.c.b16 %v229, %v227
  %v290 = vpack.c.b16 %v230, %v228
  %v291 = vpack.c.b16 %v233, %v231
  %v292 = vpack.c.b16 %v234, %v232
  %v293 = vpack.c.b16 %v237, %v235
  %v294 = vpack.c.b16 %v238, %v236
  %v295 = vpack.c.b16 %v241, %v239
  %v296 = vpack.c.b16 %v242, %v240
  %v297 = vpack.c.b16 %v245, %v243
  %v298 = vpack.c.b16 %v246, %v244
  %v299 = vpack.c.b16 %v249, %v247
  %v300 = vpack.c.b16 %v250, %v248
  %v301 = vpack.c.b16 %v253, %v251
  %v302 = vpack.c.b16 %v254, %v252
  %v303 = vpack.c.b16 %v257, %v255
  %v304 = vpack.c.b16 %v258, %v256
  %v305 = vpack.c.b16 %v261, %v259
  %v306 = vpack.c.b16 %v262, %v260
  %v307 = vpack.c.b16 %v265, %v263
  %v308 = vpack.c.b16 %v266, %v264
  %v309 = vpack.c.b16 %v269, %v267
  %v310 = vpack.c.b16 %v270, %v268
  %v311 = vpack.c.b16 %v273, %v271
  %v312 = vpack.c.b16 %v274, %v272
  %v313 = vpack.c.b16 %v277, %v275
  %v314 = vpack.c.b16 %v278, %v276
  %v315 = vpack.c.b16 %v281, %v279
  %v316 = vpack.c.b16 %v282, %v280
  %v317 = vpack.c.b16 %v285, %v283
  %v318 = vpack.c.b16 %v286, %v284
  %351 = vmatprep.subr.bf16.mxu0 %v288
  %352 = vmatpush1.bf16.msra.mxu0 %v287
  %353 = vmatprep.subr.bf16.mxu0 %v290
  %354 = vmatpush1.bf16.msra.mxu0 %v289
  %355 = vmatprep.subr.bf16.mxu0 %v292
  %356 = vmatpush1.bf16.msra.mxu0 %v291
  %357 = vmatprep.subr.bf16.mxu0 %v294
  %358 = vmatpush1.bf16.msra.mxu0 %v293
  %359 = vmatprep.subr.bf16.mxu0 %v296
  %360 = vmatpush1.bf16.msra.mxu0 %v295
  %361 = vmatprep.subr.bf16.mxu0 %v298
  %362 = vmatpush1.bf16.msra.mxu0 %v297
  %363 = vmatprep.subr.bf16.mxu0 %v300
  %364 = vmatpush1.bf16.msra.mxu0 %v299
  %365 = vmatprep.subr.bf16.mxu0 %v302
  %366 = vmatpush1.bf16.msra.mxu0 %v301
  %367 = vmatprep.subr.bf16.mxu0 %v304
  %368 = vmatpush1.bf16.msra.mxu0 %v303
  %369 = vmatprep.subr.bf16.mxu0 %v306
  %370 = vmatpush1.bf16.msra.mxu0 %v305
  %371 = vmatprep.subr.bf16.mxu0 %v308
  %372 = vmatpush1.bf16.msra.mxu0 %v307
  %373 = vmatprep.subr.bf16.mxu0 %v310
  %374 = vmatpush1.bf16.msra.mxu0 %v309
  %375 = vmatprep.subr.bf16.mxu0 %v312
  %376 = vmatpush1.bf16.msra.mxu0 %v311
  %377 = vmatprep.subr.bf16.mxu0 %v314
  %378 = vmatpush1.bf16.msra.mxu0 %v313
  %379 = vmatprep.subr.bf16.mxu0 %v316
  %380 = vmatpush1.bf16.msra.mxu0 %v315
  %381 = vmatprep.subr.bf16.mxu0 %v318
  %382 = vmatpush1.bf16.msra.mxu0 %v317
  %383 = vmatprep.mubr.bf16.mxu0 %v158
  %384 = vmatmul.mubr.bf16.gmra.mrb[0].mxu0 %v157
  %v385 = vpop.f32.mrb[0].mxu0
  %v386 = vadd.f32 %v151, %v385
  %v387 = vpop.f32.mrb[0].mxu0
  %v388 = vadd.f32 %v152, %v387
  %v389 = vpop.f32.mrb[0].mxu0
  %v390 = vpop.f32.mrb[0].mxu0
  %391 = vdwg.mxu0
  %v392 = vmax.f32 %v386, 0.0
  %v393 = vmax.f32 %v388, 0.0
  %v395 = vlaneseq
  %v396 = vshrl.u32 %v395, 7
  %v397 = vsub.s32 0, %v396
  %v398 = vrot.slane %v153, %v397
  %v399 = vlaneseq
  %v400 = vshrl.u32 %v399, 7
  %v401 = vsub.s32 1, %v400
  %v402 = vrot.slane %v153, %v401
  %v405 = vmul.f32 %v392, %v398
  %v406 = vmul.f32 %v393, %v402
  %v407 = vadd.f32 %v405, %v406
  %408 = vadd.xlane.f32.xlu0 %v407
  %v409 = vpop.xlane.xlu0 %408
  %v410 = vpack.c.bf16 %v392, %v392
  %v411 = vpack.c.bf16 %v393, %v393
  %v412 = vld [vmem:[%s6] sm:$0xf]
  %v413 = vld [vmem:[%s6 + $0x4] sm:$0xf]
  %v414 = vld [vmem:[%s6 + $0x8] sm:$0xf]
  %v415 = vld [vmem:[%s6 + $0xc] sm:$0xf]
  %v416 = vld [vmem:[%s6 + $0x10] sm:$0xf]
  %v417 = vld [vmem:[%s6 + $0x14] sm:$0xf]
  %v418 = vld [vmem:[%s6 + $0x18] sm:$0xf]
  %v419 = vld [vmem:[%s6 + $0x1c] sm:$0xf]
  %v420 = vld [vmem:[%s6 + $0x20] sm:$0xf]
  %v421 = vld [vmem:[%s6 + $0x24] sm:$0xf]
  %v422 = vld [vmem:[%s6 + $0x28] sm:$0xf]
  %v423 = vld [vmem:[%s6 + $0x2c] sm:$0xf]
  %v424 = vld [vmem:[%s6 + $0x30] sm:$0xf]
  %v425 = vld [vmem:[%s6 + $0x34] sm:$0xf]
  %v426 = vld [vmem:[%s6 + $0x38] sm:$0xf]
  %v427 = vld [vmem:[%s6 + $0x3c] sm:$0xf]
  %v428 = vld [vmem:[%s6 + $0x40] sm:$0xf]
  %v429 = vld [vmem:[%s6 + $0x44] sm:$0xf]
  %v430 = vld [vmem:[%s6 + $0x48] sm:$0xf]
  %v431 = vld [vmem:[%s6 + $0x4c] sm:$0xf]
  %v432 = vld [vmem:[%s6 + $0x50] sm:$0xf]
  %v433 = vld [vmem:[%s6 + $0x54] sm:$0xf]
  %v434 = vld [vmem:[%s6 + $0x58] sm:$0xf]
  %v435 = vld [vmem:[%s6 + $0x5c] sm:$0xf]
  %v436 = vld [vmem:[%s6 + $0x60] sm:$0xf]
  %v437 = vld [vmem:[%s6 + $0x64] sm:$0xf]
  %v438 = vld [vmem:[%s6 + $0x68] sm:$0xf]
  %v439 = vld [vmem:[%s6 + $0x6c] sm:$0xf]
  %v440 = vld [vmem:[%s6 + $0x70] sm:$0xf]
  %v441 = vld [vmem:[%s6 + $0x74] sm:$0xf]
  %v442 = vld [vmem:[%s6 + $0x78] sm:$0xf]
  %v443 = vld [vmem:[%s6 + $0x7c] sm:$0xf]
  %v445 = vlaneseq
  %v446 = vshrl.u32 %v445, 7
  %v447 = vsub.s32 0, %v446
  %v448 = vrot.slane %v154, %v447
  %v482 = vunpack.c.l.b16 %v412
  %v483 = vunpack.c.l.b16 %v413
  %v484 = vunpack.c.l.b16 %v414
  %v485 = vunpack.c.l.b16 %v415
  %v486 = vunpack.c.l.b16 %v416
  %v487 = vunpack.c.l.b16 %v417
  %v488 = vunpack.c.l.b16 %v418
  %v489 = vunpack.c.l.b16 %v419
  %v490 = vunpack.c.l.b16 %v420
  %v491 = vunpack.c.l.b16 %v421
  %v492 = vunpack.c.l.b16 %v422
  %v493 = vunpack.c.l.b16 %v423
  %v494 = vunpack.c.l.b16 %v424
  %v495 = vunpack.c.l.b16 %v425
  %v496 = vunpack.c.l.b16 %v426
  %v497 = vunpack.c.l.b16 %v427
  %v498 = vunpack.c.l.b16 %v428
  %v499 = vunpack.c.l.b16 %v429
  %v500 = vunpack.c.l.b16 %v430
  %v501 = vunpack.c.l.b16 %v431
  %v502 = vunpack.c.l.b16 %v432
  %v503 = vunpack.c.l.b16 %v433
  %v504 = vunpack.c.l.b16 %v434
  %v505 = vunpack.c.l.b16 %v435
  %v506 = vunpack.c.l.b16 %v436
  %v507 = vunpack.c.l.b16 %v437
  %v508 = vunpack.c.l.b16 %v438
  %v509 = vunpack.c.l.b16 %v439
  %v510 = vunpack.c.l.b16 %v440
  %v511 = vunpack.c.l.b16 %v441
  %v512 = vunpack.c.l.b16 %v442
  %v513 = vunpack.c.l.b16 %v443
  %v514 = vpack.c.b16 %v483, %v482
  %v515 = vpack.c.b16 %v485, %v484
  %v516 = vpack.c.b16 %v487, %v486
  %v517 = vpack.c.b16 %v489, %v488
  %v518 = vpack.c.b16 %v491, %v490
  %v519 = vpack.c.b16 %v493, %v492
  %v520 = vpack.c.b16 %v495, %v494
  %v521 = vpack.c.b16 %v497, %v496
  %v522 = vpack.c.b16 %v499, %v498
  %v523 = vpack.c.b16 %v501, %v500
  %v524 = vpack.c.b16 %v503, %v502
  %v525 = vpack.c.b16 %v505, %v504
  %v526 = vpack.c.b16 %v507, %v506
  %v527 = vpack.c.b16 %v509, %v508
  %v528 = vpack.c.b16 %v511, %v510
  %v529 = vpack.c.b16 %v513, %v512
  %546 = vmatprep.subr.bf16.mxu0 0
  %547 = vmatpush1.bf16.msra.mxu0 %v514
  %548 = vmatprep.subr.bf16.mxu0 0
  %549 = vmatpush1.bf16.msra.mxu0 %v515
  %550 = vmatprep.subr.bf16.mxu0 0
  %551 = vmatpush1.bf16.msra.mxu0 %v516
  %552 = vmatprep.subr.bf16.mxu0 0
  %553 = vmatpush1.bf16.msra.mxu0 %v517
  %554 = vmatprep.subr.bf16.mxu0 0
  %555 = vmatpush1.bf16.msra.mxu0 %v518
  %556 = vmatprep.subr.bf16.mxu0 0
  %557 = vmatpush1.bf16.msra.mxu0 %v519
  %558 = vmatprep.subr.bf16.mxu0 0
  %559 = vmatpush1.bf16.msra.mxu0 %v520
  %560 = vmatprep.subr.bf16.mxu0 0
  %561 = vmatpush1.bf16.msra.mxu0 %v521
  %562 = vmatprep.subr.bf16.mxu0 0
  %563 = vmatpush1.bf16.msra.mxu0 %v522
  %564 = vmatprep.subr.bf16.mxu0 0
  %565 = vmatpush1.bf16.msra.mxu0 %v523
  %566 = vmatprep.subr.bf16.mxu0 0
  %567 = vmatpush1.bf16.msra.mxu0 %v524
  %568 = vmatprep.subr.bf16.mxu0 0
  %569 = vmatpush1.bf16.msra.mxu0 %v525
  %570 = vmatprep.subr.bf16.mxu0 0
  %571 = vmatpush1.bf16.msra.mxu0 %v526
  %572 = vmatprep.subr.bf16.mxu0 0
  %573 = vmatpush1.bf16.msra.mxu0 %v527
  %574 = vmatprep.subr.bf16.mxu0 0
  %575 = vmatpush1.bf16.msra.mxu0 %v528
  %576 = vmatprep.subr.bf16.mxu0 0
  %577 = vmatpush1.bf16.msra.mxu0 %v529
  %578 = vmatprep.mubr.bf16.mxu0 %v411
  %579 = vmatmul.mubr.bf16.gmra.mrb[0].mxu0 %v410
  %v580 = vpop.f32.mrb[0].mxu0
  %v581 = vadd.f32 %v448, %v580
  %v582 = vpop.f32.mrb[0].mxu0
  %v583 = vpop.f32.mrb[0].mxu0
  %v584 = vpop.f32.mrb[0].mxu0
  %585 = vdwg.mxu0
  %v586 = vmax.f32 %v581, 0.0
  %v587 = vpack.c.bf16 %v586, %v586
  %v588 = vld [vmem:[%s8] sm:$0xff]
  %v589 = vld [vmem:[%s8 + $0x8] sm:$0xff]
  %v590 = vld [vmem:[%s8 + $0x10] sm:$0xff]
  %v591 = vld [vmem:[%s8 + $0x18] sm:$0xff]
  %v592 = vld [vmem:[%s8 + $0x20] sm:$0xff]
  %v593 = vld [vmem:[%s8 + $0x28] sm:$0xff]
  %v594 = vld [vmem:[%s8 + $0x30] sm:$0xff]
  %v595 = vld [vmem:[%s8 + $0x38] sm:$0xff]
  %v596 = vld [vmem:[%s8 + $0x40] sm:$0xff]
  %v597 = vld [vmem:[%s8 + $0x48] sm:$0xff]
  %v598 = vld [vmem:[%s8 + $0x50] sm:$0xff]
  %v599 = vld [vmem:[%s8 + $0x58] sm:$0xff]
  %v600 = vld [vmem:[%s8 + $0x60] sm:$0xff]
  %v601 = vld [vmem:[%s8 + $0x68] sm:$0xff]
  %v602 = vld [vmem:[%s8 + $0x70] sm:$0xff]
  %v603 = vld [vmem:[%s8 + $0x78] sm:$0xff]
  %v604 = vld [vmem:[%s10] sm:$0xff]
  %v605 = vld [vmem:[%s10 + $0x8] sm:$0xff]
  %v606 = vld [vmem:[%s10 + $0x10] sm:$0xff]
  %v607 = vld [vmem:[%s10 + $0x18] sm:$0xff]
  %v608 = vld [vmem:[%s10 + $0x20] sm:$0xff]
  %v609 = vld [vmem:[%s10 + $0x28] sm:$0xff]
  %v610 = vld [vmem:[%s10 + $0x30] sm:$0xff]
  %v611 = vld [vmem:[%s10 + $0x38] sm:$0xff]
  %v620 = vunpack.c.l.b16 %v604
  %v621 = vunpack.c.h.b16 %v604
  %v622 = vunpack.c.l.b16 %v605
  %v623 = vunpack.c.h.b16 %v605
  %v624 = vunpack.c.l.b16 %v606
  %v625 = vunpack.c.h.b16 %v606
  %v626 = vunpack.c.l.b16 %v607
  %v627 = vunpack.c.h.b16 %v607
  %v628 = vunpack.c.l.b16 %v608
  %v629 = vunpack.c.h.b16 %v608
  %v630 = vunpack.c.l.b16 %v609
  %v631 = vunpack.c.h.b16 %v609
  %v632 = vunpack.c.l.b16 %v610
  %v633 = vunpack.c.h.b16 %v610
  %v634 = vunpack.c.l.b16 %v611
  %v635 = vunpack.c.h.b16 %v611
  %v636 = vpack.c.b16 %v622, %v620
  %v637 = vpack.c.b16 %v623, %v621
  %v638 = vpack.c.b16 %v626, %v624
  %v639 = vpack.c.b16 %v627, %v625
  %v640 = vpack.c.b16 %v630, %v628
  %v641 = vpack.c.b16 %v631, %v629
  %v642 = vpack.c.b16 %v634, %v632
  %v643 = vpack.c.b16 %v635, %v633
  %v653 = vsel %vm104, 0, 0
  %655 = vmatprep.subr.bf16.mxu0 %v637
  %656 = vmatpush1.bf16.msra.mxu0 %v636
  %657 = vmatprep.subr.bf16.mxu0 %v639
  %658 = vmatpush1.bf16.msra.mxu0 %v638
  %659 = vmatprep.subr.bf16.mxu0 %v641
  %660 = vmatpush1.bf16.msra.mxu0 %v640
  %661 = vmatprep.subr.bf16.mxu0 %v643
  %662 = vmatpush1.bf16.msra.mxu0 %v642
  %663 = vmatprep.subr.bf16.mxu0 0
  %664 = vmatpush1.bf16.msra.mxu0 0
  %665 = vmatprep.subr.bf16.mxu0 0
  %666 = vmatpush1.bf16.msra.mxu0 0
  %667 = vmatprep.subr.bf16.mxu0 0
  %668 = vmatpush1.bf16.msra.mxu0 0
  %669 = vmatprep.subr.bf16.mxu0 0
  %670 = vmatpush1.bf16.msra.mxu0 0
  %671 = vmatprep.subr.bf16.mxu0 0
  %672 = vmatpush1.bf16.msra.mxu0 0
  %673 = vmatprep.subr.bf16.mxu0 0
  %674 = vmatpush1.bf16.msra.mxu0 0
  %675 = vmatprep.subr.bf16.mxu0 0
  %676 = vmatpush1.bf16.msra.mxu0 0
  %677 = vmatprep.subr.bf16.mxu0 0
  %678 = vmatpush1.bf16.msra.mxu0 0
  %679 = vmatprep.subr.bf16.mxu0 0
  %680 = vmatpush1.bf16.msra.mxu0 0
  %681 = vmatprep.subr.bf16.mxu0 0
  %682 = vmatpush1.bf16.msra.mxu0 0
  %683 = vmatprep.subr.bf16.mxu0 0
  %684 = vmatpush1.bf16.msra.mxu0 0
  %685 = vmatprep.subr.bf16.mxu0 0
  %686 = vmatpush1.bf16.msra.mxu0 0
  %687 = vmatprep.mubr.bf16.mxu0 0
  %688 = vmatmul.mubr.bf16.gmra.mrb[0].mxu0 %v653
  %v689 = vpop.f32.mrb[0].mxu0
  %v690 = vadd.f32 0.0, %v689
  %v691 = vpop.f32.mrb[0].mxu0
  %v692 = vadd.f32 0.0, %v691
  %v693 = vpop.f32.mrb[0].mxu0
  %v694 = vpop.f32.mrb[0].mxu0
  %695 = vdwg.mxu0
  %v712 = vunpack.c.l.b16 %v588
  %v713 = vunpack.c.h.b16 %v588
  %v714 = vunpack.c.l.b16 %v589
  %v715 = vunpack.c.h.b16 %v589
  %v716 = vunpack.c.l.b16 %v590
  %v717 = vunpack.c.h.b16 %v590
  %v718 = vunpack.c.l.b16 %v591
  %v719 = vunpack.c.h.b16 %v591
  %v720 = vunpack.c.l.b16 %v592
  %v721 = vunpack.c.h.b16 %v592
  %v722 = vunpack.c.l.b16 %v593
  %v723 = vunpack.c.h.b16 %v593
  %v724 = vunpack.c.l.b16 %v594
  %v725 = vunpack.c.h.b16 %v594
  %v726 = vunpack.c.l.b16 %v595
  %v727 = vunpack.c.h.b16 %v595
  %v728 = vunpack.c.l.b16 %v596
  %v729 = vunpack.c.h.b16 %v596
  %v730 = vunpack.c.l.b16 %v597
  %v731 = vunpack.c.h.b16 %v597
  %v732 = vunpack.c.l.b16 %v598
  %v733 = vunpack.c.h.b16 %v598
  %v734 = vunpack.c.l.b16 %v599
  %v735 = vunpack.c.h.b16 %v599
  %v736 = vunpack.c.l.b16 %v600
  %v737 = vunpack.c.h.b16 %v600
  %v738 = vunpack.c.l.b16 %v601
  %v739 = vunpack.c.h.b16 %v601
  %v740 = vunpack.c.l.b16 %v602
  %v741 = vunpack.c.h.b16 %v602
  %v742 = vunpack.c.l.b16 %v603
  %v743 = vunpack.c.h.b16 %v603
  %v744 = vpack.c.b16 %v714, %v712
  %v745 = vpack.c.b16 %v715, %v713
  %v746 = vpack.c.b16 %v718, %v716
  %v747 = vpack.c.b16 %v719, %v717
  %v748 = vpack.c.b16 %v722, %v720
  %v749 = vpack.c.b16 %v723, %v721
  %v750 = vpack.c.b16 %v726, %v724
  %v751 = vpack.c.b16 %v727, %v725
  %v752 = vpack.c.b16 %v730, %v728
  %v753 = vpack.c.b16 %v731, %v729
  %v754 = vpack.c.b16 %v734, %v732
  %v755 = vpack.c.b16 %v735, %v733
  %v756 = vpack.c.b16 %v738, %v736
  %v757 = vpack.c.b16 %v739, %v737
  %v758 = vpack.c.b16 %v742, %v740
  %v759 = vpack.c.b16 %v743, %v741
  %776 = vmatprep.subr.bf16.mxu0 %v745
  %777 = vmatpush1.bf16.msra.mxu0 %v744
  %778 = vmatprep.subr.bf16.mxu0 %v747
  %779 = vmatpush1.bf16.msra.mxu0 %v746
  %780 = vmatprep.subr.bf16.mxu0 %v749
  %781 = vmatpush1.bf16.msra.mxu0 %v748
  %782 = vmatprep.subr.bf16.mxu0 %v751
  %783 = vmatpush1.bf16.msra.mxu0 %v750
  %784 = vmatprep.subr.bf16.mxu0 %v753
  %785 = vmatpush1.bf16.msra.mxu0 %v752
  %786 = vmatprep.subr.bf16.mxu0 %v755
  %787 = vmatpush1.bf16.msra.mxu0 %v754
  %788 = vmatprep.subr.bf16.mxu0 %v757
  %789 = vmatpush1.bf16.msra.mxu0 %v756
  %790 = vmatprep.subr.bf16.mxu0 %v759
  %791 = vmatpush1.bf16.msra.mxu0 %v758
  %792 = vmatprep.subr.bf16.mxu0 0
  %793 = vmatpush1.bf16.msra.mxu0 0
  %794 = vmatprep.subr.bf16.mxu0 0
  %795 = vmatpush1.bf16.msra.mxu0 0
  %796 = vmatprep.subr.bf16.mxu0 0
  %797 = vmatpush1.bf16.msra.mxu0 0
  %798 = vmatprep.subr.bf16.mxu0 0
  %799 = vmatpush1.bf16.msra.mxu0 0
  %800 = vmatprep.subr.bf16.mxu0 0
  %801 = vmatpush1.bf16.msra.mxu0 0
  %802 = vmatprep.subr.bf16.mxu0 0
  %803 = vmatpush1.bf16.msra.mxu0 0
  %804 = vmatprep.subr.bf16.mxu0 0
  %805 = vmatpush1.bf16.msra.mxu0 0
  %806 = vmatprep.subr.bf16.mxu0 0
  %807 = vmatpush1.bf16.msra.mxu0 0
  %808 = vmatprep.mubr.bf16.mxu0 0
  %809 = vmatmul.mubr.bf16.gmra.mrb[0].mxu0 %v587
  %v810 = vpop.f32.mrb[0].mxu0
  %v811 = vadd.f32 %v690, %v810
  %v812 = vpop.f32.mrb[0].mxu0
  %v813 = vadd.f32 %v692, %v812
  %v814 = vpop.f32.mrb[0].mxu0
  %v815 = vpop.f32.mrb[0].mxu0
  %816 = vdwg.mxu0
  %v818 = vlaneseq
  %v819 = vshrl.u32 %v818, 7
  %v820 = vsub.s32 0, %v819
  %v821 = vrot.slane %v155, %v820
  %v822 = vlaneseq
  %v823 = vshrl.u32 %v822, 7
  %v824 = vsub.s32 1, %v823
  %v825 = vrot.slane %v155, %v824
  %v828 = vmul.f32 %v409, %v821
  %v829 = vmul.f32 %v409, %v825
  %v830 = vadd.f32 %v811, %v828
  %v831 = vadd.f32 %v813, %v829
  %v833 = vlaneseq
  %v834 = vshrl.u32 %v833, 7
  %v835 = vsub.s32 0, %v834
  %v836 = vrot.slane %v156, %v835
  %v837 = vlaneseq
  %v838 = vshrl.u32 %v837, 7
  %v839 = vsub.s32 1, %v838
  %v840 = vrot.slane %v156, %v839
  %v843 = vadd.f32 %v830, %v836
  %v844 = vadd.f32 %v831, %v840
  %v845 = vxor.u32 %v843, 2147483648
  %v846 = vmul.f32 %v845, 1.442695
  %v847 = vpow.pop %v846
  %v848 = vadd.f32 %v847, 1.0
  %v849 = vrcp.pop %v848
  %v850 = vmul.f32 1.0, %v849
  %v851 = vtanh.pop %v844
  %v852 = vxor.u32 %v844, 2147483648
  %v853 = vmul.f32 %v852, 1.442695
  %v854 = vpow.pop %v853
  %v855 = vadd.f32 %v854, 1.0
  %v856 = vrcp.pop %v855
  %v857 = vmul.f32 1.0, %v856
  %v858 = vmul.f32 %v850, 0.0
  %v859 = vmul.f32 %v850, %v851
  %861 = vrot.lane.b32.xlu0 %v859, 64
  %v862 = vpop.permute.xlu0 %861
  %v864 = vadd.f32 %v858, %v862
  %v865 = vtanh.pop %v864
  %v866 = vmul.f32 %v857, %v865
  %867 = vmatprep.subr.bf16.mxu0 %v288
  %868 = vmatpush1.bf16.msra.mxu0 %v287
  %869 = vmatprep.subr.bf16.mxu0 %v290
  %870 = vmatpush1.bf16.msra.mxu0 %v289
  %871 = vmatprep.subr.bf16.mxu0 %v292
  %872 = vmatpush1.bf16.msra.mxu0 %v291
  %873 = vmatprep.subr.bf16.mxu0 %v294
  %874 = vmatpush1.bf16.msra.mxu0 %v293
  %875 = vmatprep.subr.bf16.mxu0 %v296
  %876 = vmatpush1.bf16.msra.mxu0 %v295
  %877 = vmatprep.subr.bf16.mxu0 %v298
  %878 = vmatpush1.bf16.msra.mxu0 %v297
  %879 = vmatprep.subr.bf16.mxu0 %v300
  %880 = vmatpush1.bf16.msra.mxu0 %v299
  %881 = vmatprep.subr.bf16.mxu0 %v302
  %882 = vmatpush1.bf16.msra.mxu0 %v301
  %883 = vmatprep.subr.bf16.mxu0 %v304
  %884 = vmatpush1.bf16.msra.mxu0 %v303
  %885 = vmatprep.subr.bf16.mxu0 %v306
  %886 = vmatpush1.bf16.msra.mxu0 %v305
  %887 = vmatprep.subr.bf16.mxu0 %v308
  %888 = vmatpush1.bf16.msra.mxu0 %v307
  %889 = vmatprep.subr.bf16.mxu0 %v310
  %890 = vmatpush1.bf16.msra.mxu0 %v309
  %891 = vmatprep.subr.bf16.mxu0 %v312
  %892 = vmatpush1.bf16.msra.mxu0 %v311
  %893 = vmatprep.subr.bf16.mxu0 %v314
  %894 = vmatpush1.bf16.msra.mxu0 %v313
  %895 = vmatprep.subr.bf16.mxu0 %v316
  %896 = vmatpush1.bf16.msra.mxu0 %v315
  %897 = vmatprep.subr.bf16.mxu0 %v318
  %898 = vmatpush1.bf16.msra.mxu0 %v317
  %899 = vmatprep.mubr.bf16.mxu0 %v411
  %900 = vmatmul.mubr.bf16.gmra.mrb[0].mxu0 %v410
  %v901 = vpop.f32.mrb[0].mxu0
  %v902 = vadd.f32 %v151, %v901
  %v903 = vpop.f32.mrb[0].mxu0
  %v904 = vadd.f32 %v152, %v903
  %v905 = vpop.f32.mrb[0].mxu0
  %v906 = vpop.f32.mrb[0].mxu0
  %907 = vdwg.mxu0
  %v908 = vmax.f32 %v902, 0.0
  %v909 = vmax.f32 %v904, 0.0
  %v910 = vmul.f32 %v908, %v398
  %v911 = vmul.f32 %v909, %v402
  %v912 = vadd.f32 %v910, %v911
  %913 = vadd.xlane.f32.xlu0 %v912
  %v914 = vpop.xlane.xlu0 %913
  %v915 = vpack.c.bf16 %v908, %v908
  %v916 = vpack.c.bf16 %v909, %v909
  %917 = vmatprep.subr.bf16.mxu0 0
  %918 = vmatpush1.bf16.msra.mxu0 %v514
  %919 = vmatprep.subr.bf16.mxu0 0
  %920 = vmatpush1.bf16.msra.mxu0 %v515
  %921 = vmatprep.subr.bf16.mxu0 0
  %922 = vmatpush1.bf16.msra.mxu0 %v516
  %923 = vmatprep.subr.bf16.mxu0 0
  %924 = vmatpush1.bf16.msra.mxu0 %v517
  %925 = vmatprep.subr.bf16.mxu0 0
  %926 = vmatpush1.bf16.msra.mxu0 %v518
  %927 = vmatprep.subr.bf16.mxu0 0
  %928 = vmatpush1.bf16.msra.mxu0 %v519
  %929 = vmatprep.subr.bf16.mxu0 0
  %930 = vmatpush1.bf16.msra.mxu0 %v520
  %931 = vmatprep.subr.bf16.mxu0 0
  %932 = vmatpush1.bf16.msra.mxu0 %v521
  %933 = vmatprep.subr.bf16.mxu0 0
  %934 = vmatpush1.bf16.msra.mxu0 %v522
  %935 = vmatprep.subr.bf16.mxu0 0
  %936 = vmatpush1.bf16.msra.mxu0 %v523
  %937 = vmatprep.subr.bf16.mxu0 0
  %938 = vmatpush1.bf16.msra.mxu0 %v524
  %939 = vmatprep.subr.bf16.mxu0 0
  %940 = vmatpush1.bf16.msra.mxu0 %v525
  %941 = vmatprep.subr.bf16.mxu0 0
  %942 = vmatpush1.bf16.msra.mxu0 %v526
  %943 = vmatprep.subr.bf16.mxu0 0
  %944 = vmatpush1.bf16.msra.mxu0 %v527
  %945 = vmatprep.subr.bf16.mxu0 0
  %946 = vmatpush1.bf16.msra.mxu0 %v528
  %947 = vmatprep.subr.bf16.mxu0 0
  %948 = vmatpush1.bf16.msra.mxu0 %v529
  %949 = vmatprep.mubr.bf16.mxu0 %v916
  %950 = vmatmul.mubr.bf16.gmra.mrb[0].mxu0 %v915
  %v951 = vpop.f32.mrb[0].mxu0
  %v952 = vadd.f32 %v448, %v951
  %v953 = vpop.f32.mrb[0].mxu0
  %v954 = vpop.f32.mrb[0].mxu0
  %v955 = vpop.f32.mrb[0].mxu0
  %956 = vdwg.mxu0
  %v957 = vmax.f32 %v952, 0.0
  %v958 = vpack.c.bf16 %v957, %v957
  %v959 = vpack.c.bf16 %v866, %v866
  %961 = vrot.lane.b32.xlu0 %v959, 64
  %v962 = vpop.permute.xlu0 %961
  %v964 = vsel %vm104, %v962, 0
  %966 = vmatprep.subr.bf16.mxu0 %v637
  %967 = vmatpush1.bf16.msra.mxu0 %v636
  %968 = vmatprep.subr.bf16.mxu0 %v639
  %969 = vmatpush1.bf16.msra.mxu0 %v638
  %970 = vmatprep.subr.bf16.mxu0 %v641
  %971 = vmatpush1.bf16.msra.mxu0 %v640
  %972 = vmatprep.subr.bf16.mxu0 %v643
  %973 = vmatpush1.bf16.msra.mxu0 %v642
  %974 = vmatprep.subr.bf16.mxu0 0
  %975 = vmatpush1.bf16.msra.mxu0 0
  %976 = vmatprep.subr.bf16.mxu0 0
  %977 = vmatpush1.bf16.msra.mxu0 0
  %978 = vmatprep.subr.bf16.mxu0 0
  %979 = vmatpush1.bf16.msra.mxu0 0
  %980 = vmatprep.subr.bf16.mxu0 0
  %981 = vmatpush1.bf16.msra.mxu0 0
  %982 = vmatprep.subr.bf16.mxu0 0
  %983 = vmatpush1.bf16.msra.mxu0 0
  %984 = vmatprep.subr.bf16.mxu0 0
  %985 = vmatpush1.bf16.msra.mxu0 0
  %986 = vmatprep.subr.bf16.mxu0 0
  %987 = vmatpush1.bf16.msra.mxu0 0
  %988 = vmatprep.subr.bf16.mxu0 0
  %989 = vmatpush1.bf16.msra.mxu0 0
  %990 = vmatprep.subr.bf16.mxu0 0
  %991 = vmatpush1.bf16.msra.mxu0 0
  %992 = vmatprep.subr.bf16.mxu0 0
  %993 = vmatpush1.bf16.msra.mxu0 0
  %994 = vmatprep.subr.bf16.mxu0 0
  %995 = vmatpush1.bf16.msra.mxu0 0
  %996 = vmatprep.subr.bf16.mxu0 0
  %997 = vmatpush1.bf16.msra.mxu0 0
  %998 = vmatprep.mubr.bf16.mxu0 0
  %999 = vmatmul.mubr.bf16.gmra.mrb[0].mxu0 %v964
  %v1000 = vpop.f32.mrb[0].mxu0
  %v1001 = vadd.f32 0.0, %v1000
  %v1002 = vpop.f32.mrb[0].mxu0
  %v1003 = vadd.f32 0.0, %v1002
  %v1004 = vpop.f32.mrb[0].mxu0
  %v1005 = vpop.f32.mrb[0].mxu0
  %1006 = vdwg.mxu0
  %1007 = vmatprep.subr.bf16.mxu0 %v745
  %1008 = vmatpush1.bf16.msra.mxu0 %v744
  %1009 = vmatprep.subr.bf16.mxu0 %v747
  %1010 = vmatpush1.bf16.msra.mxu0 %v746
  %1011 = vmatprep.subr.bf16.mxu0 %v749
  %1012 = vmatpush1.bf16.msra.mxu0 %v748
  %1013 = vmatprep.subr.bf16.mxu0 %v751
  %1014 = vmatpush1.bf16.msra.mxu0 %v750
  %1015 = vmatprep.subr.bf16.mxu0 %v753
  %1016 = vmatpush1.bf16.msra.mxu0 %v752
  %1017 = vmatprep.subr.bf16.mxu0 %v755
  %1018 = vmatpush1.bf16.msra.mxu0 %v754
  %1019 = vmatprep.subr.bf16.mxu0 %v757
  %1020 = vmatpush1.bf16.msra.mxu0 %v756
  %1021 = vmatprep.subr.bf16.mxu0 %v759
  %1022 = vmatpush1.bf16.msra.mxu0 %v758
  %1023 = vmatprep.subr.bf16.mxu0 0
  %1024 = vmatpush1.bf16.msra.mxu0 0
  %1025 = vmatprep.subr.bf16.mxu0 0
  %1026 = vmatpush1.bf16.msra.mxu0 0
  %1027 = vmatprep.subr.bf16.mxu0 0
  %1028 = vmatpush1.bf16.msra.mxu0 0
  %1029 = vmatprep.subr.bf16.mxu0 0
  %1030 = vmatpush1.bf16.msra.mxu0 0
  %1031 = vmatprep.subr.bf16.mxu0 0
  %1032 = vmatpush1.bf16.msra.mxu0 0
  %1033 = vmatprep.subr.bf16.mxu0 0
  %1034 = vmatpush1.bf16.msra.mxu0 0
  %1035 = vmatprep.subr.bf16.mxu0 0
  %1036 = vmatpush1.bf16.msra.mxu0 0
  %1037 = vmatprep.subr.bf16.mxu0 0
  %1038 = vmatpush1.bf16.msra.mxu0 0
  %1039 = vmatprep.mubr.bf16.mxu0 0
  %1040 = vmatmul.mubr.bf16.gmra.mrb[0].mxu0 %v958
  %v1041 = vpop.f32.mrb[0].mxu0
  %v1042 = vadd.f32 %v1001, %v1041
  %v1043 = vpop.f32.mrb[0].mxu0
  %v1044 = vadd.f32 %v1003, %v1043
  %v1045 = vpop.f32.mrb[0].mxu0
  %v1046 = vpop.f32.mrb[0].mxu0
  %1047 = vdwg.mxu0
  %v1048 = vmul.f32 %v914, %v821
  %v1049 = vmul.f32 %v914, %v825
  %v1050 = vadd.f32 %v1042, %v1048
  %v1051 = vadd.f32 %v1044, %v1049
  %v1052 = vadd.f32 %v1050, %v836
  %v1053 = vadd.f32 %v1051, %v840
  %v1054 = vxor.u32 %v1052, 2147483648
  %v1055 = vmul.f32 %v1054, 1.442695
  %v1056 = vpow.pop %v1055
  %v1057 = vadd.f32 %v1056, 1.0
  %v1058 = vrcp.pop %v1057
  %v1059 = vmul.f32 1.0, %v1058
  %v1060 = vtanh.pop %v1053
  %v1061 = vxor.u32 %v1053, 2147483648
  %v1062 = vmul.f32 %v1061, 1.442695
  %v1063 = vpow.pop %v1062
  %v1064 = vadd.f32 %v1063, 1.0
  %v1065 = vrcp.pop %v1064
  %v1066 = vmul.f32 1.0, %v1065
  %v1067 = vmul.f32 %v1059, %v864
  %v1068 = vmul.f32 %v1059, %v1060
  %1070 = vrot.lane.b32.xlu0 %v1068, 64
  %v1071 = vpop.permute.xlu0 %1070
  %v1073 = vadd.f32 %v1067, %v1071
  %v1074 = vtanh.pop %v1073
  %v1075 = vmul.f32 %v1066, %v1074
  %1076 = vmatprep.subr.bf16.mxu0 %v288
  %1077 = vmatpush1.bf16.msra.mxu0 %v287
  %1078 = vmatprep.subr.bf16.mxu0 %v290
  %1079 = vmatpush1.bf16.msra.mxu0 %v289
  %1080 = vmatprep.subr.bf16.mxu0 %v292
  %1081 = vmatpush1.bf16.msra.mxu0 %v291
  %1082 = vmatprep.subr.bf16.mxu0 %v294
  %1083 = vmatpush1.bf16.msra.mxu0 %v293
  %1084 = vmatprep.subr.bf16.mxu0 %v296
  %1085 = vmatpush1.bf16.msra.mxu0 %v295
  %1086 = vmatprep.subr.bf16.mxu0 %v298
  %1087 = vmatpush1.bf16.msra.mxu0 %v297
  %1088 = vmatprep.subr.bf16.mxu0 %v300
  %1089 = vmatpush1.bf16.msra.mxu0 %v299
  %1090 = vmatprep.subr.bf16.mxu0 %v302
  %1091 = vmatpush1.bf16.msra.mxu0 %v301
  %1092 = vmatprep.subr.bf16.mxu0 %v304
  %1093 = vmatpush1.bf16.msra.mxu0 %v303
  %1094 = vmatprep.subr.bf16.mxu0 %v306
  %1095 = vmatpush1.bf16.msra.mxu0 %v305
  %1096 = vmatprep.subr.bf16.mxu0 %v308
  %1097 = vmatpush1.bf16.msra.mxu0 %v307
  %1098 = vmatprep.subr.bf16.mxu0 %v310
  %1099 = vmatpush1.bf16.msra.mxu0 %v309
  %1100 = vmatprep.subr.bf16.mxu0 %v312
  %1101 = vmatpush1.bf16.msra.mxu0 %v311
  %1102 = vmatprep.subr.bf16.mxu0 %v314
  %1103 = vmatpush1.bf16.msra.mxu0 %v313
  %1104 = vmatprep.subr.bf16.mxu0 %v316
  %1105 = vmatpush1.bf16.msra.mxu0 %v315
  %1106 = vmatprep.subr.bf16.mxu0 %v318
  %1107 = vmatpush1.bf16.msra.mxu0 %v317
  %1108 = vmatprep.mubr.bf16.mxu0 %v916
  %1109 = vmatmul.mubr.bf16.gmra.mrb[0].mxu0 %v915
  %v1110 = vpop.f32.mrb[0].mxu0
  %v1111 = vadd.f32 %v151, %v1110
  %v1112 = vpop.f32.mrb[0].mxu0
  %v1113 = vadd.f32 %v152, %v1112
  %v1114 = vpop.f32.mrb[0].mxu0
  %v1115 = vpop.f32.mrb[0].mxu0
  %1116 = vdwg.mxu0
  %v1117 = vmax.f32 %v1111, 0.0
  %v1118 = vmax.f32 %v1113, 0.0
  %v1119 = vmul.f32 %v1117, %v398
  %v1120 = vmul.f32 %v1118, %v402
  %v1121 = vadd.f32 %v1119, %v1120
  %1122 = vadd.xlane.f32.xlu0 %v1121
  %v1123 = vpop.xlane.xlu0 %1122
  %v1124 = vpack.c.bf16 %v1117, %v1117
  %v1125 = vpack.c.bf16 %v1118, %v1118
  %1126 = vmatprep.subr.bf16.mxu0 0
  %1127 = vmatpush1.bf16.msra.mxu0 %v514
  %1128 = vmatprep.subr.bf16.mxu0 0
  %1129 = vmatpush1.bf16.msra.mxu0 %v515
  %1130 = vmatprep.subr.bf16.mxu0 0
  %1131 = vmatpush1.bf16.msra.mxu0 %v516
  %1132 = vmatprep.subr.bf16.mxu0 0
  %1133 = vmatpush1.bf16.msra.mxu0 %v517
  %1134 = vmatprep.subr.bf16.mxu0 0
  %1135 = vmatpush1.bf16.msra.mxu0 %v518
  %1136 = vmatprep.subr.bf16.mxu0 0
  %1137 = vmatpush1.bf16.msra.mxu0 %v519
  %1138 = vmatprep.subr.bf16.mxu0 0
  %1139 = vmatpush1.bf16.msra.mxu0 %v520
  %1140 = vmatprep.subr.bf16.mxu0 0
  %1141 = vmatpush1.bf16.msra.mxu0 %v521
  %1142 = vmatprep.subr.bf16.mxu0 0
  %1143 = vmatpush1.bf16.msra.mxu0 %v522
  %1144 = vmatprep.subr.bf16.mxu0 0
  %1145 = vmatpush1.bf16.msra.mxu0 %v523
  %1146 = vmatprep.subr.bf16.mxu0 0
  %1147 = vmatpush1.bf16.msra.mxu0 %v524
  %1148 = vmatprep.subr.bf16.mxu0 0
  %1149 = vmatpush1.bf16.msra.mxu0 %v525
  %1150 = vmatprep.subr.bf16.mxu0 0
  %1151 = vmatpush1.bf16.msra.mxu0 %v526
  %1152 = vmatprep.subr.bf16.mxu0 0
  %1153 = vmatpush1.bf16.msra.mxu0 %v527
  %1154 = vmatprep.subr.bf16.mxu0 0
  %1155 = vmatpush1.bf16.msra.mxu0 %v528
  %1156 = vmatprep.subr.bf16.mxu0 0
  %1157 = vmatpush1.bf16.msra.mxu0 %v529
  %1158 = vmatprep.mubr.bf16.mxu0 %v1125
  %1159 = vmatmul.mubr.bf16.gmra.mrb[0].mxu0 %v1124
  %v1160 = vpop.f32.mrb[0].mxu0
  %v1161 = vadd.f32 %v448, %v1160
  %v1162 = vpop.f32.mrb[0].mxu0
  %v1163 = vpop.f32.mrb[0].mxu0
  %v1164 = vpop.f32.mrb[0].mxu0
  %1165 = vdwg.mxu0
  %v1166 = vmax.f32 %v1161, 0.0
  %v1167 = vpack.c.bf16 %v1166, %v1166
  %v1168 = vpack.c.bf16 %v1075, %v1075
  %1170 = vrot.lane.b32.xlu0 %v1168, 64
  %v1171 = vpop.permute.xlu0 %1170
  %v1173 = vsel %vm104, %v1171, 0
  %1175 = vmatprep.subr.bf16.mxu0 %v637
  %1176 = vmatpush1.bf16.msra.mxu0 %v636
  %1177 = vmatprep.subr.bf16.mxu0 %v639
  %1178 = vmatpush1.bf16.msra.mxu0 %v638
  %1179 = vmatprep.subr.bf16.mxu0 %v641
  %1180 = vmatpush1.bf16.msra.mxu0 %v640
  %1181 = vmatprep.subr.bf16.mxu0 %v643
  %1182 = vmatpush1.bf16.msra.mxu0 %v642
  %1183 = vmatprep.subr.bf16.mxu0 0
  %1184 = vmatpush1.bf16.msra.mxu0 0
  %1185 = vmatprep.subr.bf16.mxu0 0
  %1186 = vmatpush1.bf16.msra.mxu0 0
  %1187 = vmatprep.subr.bf16.mxu0 0
  %1188 = vmatpush1.bf16.msra.mxu0 0
  %1189 = vmatprep.subr.bf16.mxu0 0
  %1190 = vmatpush1.bf16.msra.mxu0 0
  %1191 = vmatprep.subr.bf16.mxu0 0
  %1192 = vmatpush1.bf16.msra.mxu0 0
  %1193 = vmatprep.subr.bf16.mxu0 0
  %1194 = vmatpush1.bf16.msra.mxu0 0
  %1195 = vmatprep.subr.bf16.mxu0 0
  %1196 = vmatpush1.bf16.msra.mxu0 0
  %1197 = vmatprep.subr.bf16.mxu0 0
  %1198 = vmatpush1.bf16.msra.mxu0 0
  %1199 = vmatprep.subr.bf16.mxu0 0
  %1200 = vmatpush1.bf16.msra.mxu0 0
  %1201 = vmatprep.subr.bf16.mxu0 0
  %1202 = vmatpush1.bf16.msra.mxu0 0
  %1203 = vmatprep.subr.bf16.mxu0 0
  %1204 = vmatpush1.bf16.msra.mxu0 0
  %1205 = vmatprep.subr.bf16.mxu0 0
  %1206 = vmatpush1.bf16.msra.mxu0 0
  %1207 = vmatprep.mubr.bf16.mxu0 0
  %1208 = vmatmul.mubr.bf16.gmra.mrb[0].mxu0 %v1173
  %v1209 = vpop.f32.mrb[0].mxu0
  %v1210 = vadd.f32 0.0, %v1209
  %v1211 = vpop.f32.mrb[0].mxu0
  %v1212 = vadd.f32 0.0, %v1211
  %v1213 = vpop.f32.mrb[0].mxu0
  %v1214 = vpop.f32.mrb[0].mxu0
  %1215 = vdwg.mxu0
  %1216 = vmatprep.subr.bf16.mxu0 %v745
  %1217 = vmatpush1.bf16.msra.mxu0 %v744
  %1218 = vmatprep.subr.bf16.mxu0 %v747
  %1219 = vmatpush1.bf16.msra.mxu0 %v746
  %1220 = vmatprep.subr.bf16.mxu0 %v749
  %1221 = vmatpush1.bf16.msra.mxu0 %v748
  %1222 = vmatprep.subr.bf16.mxu0 %v751
  %1223 = vmatpush1.bf16.msra.mxu0 %v750
  %1224 = vmatprep.subr.bf16.mxu0 %v753
  %1225 = vmatpush1.bf16.msra.mxu0 %v752
  %1226 = vmatprep.subr.bf16.mxu0 %v755
  %1227 = vmatpush1.bf16.msra.mxu0 %v754
  %1228 = vmatprep.subr.bf16.mxu0 %v757
  %1229 = vmatpush1.bf16.msra.mxu0 %v756
  %1230 = vmatprep.subr.bf16.mxu0 %v759
  %1231 = vmatpush1.bf16.msra.mxu0 %v758
  %1232 = vmatprep.subr.bf16.mxu0 0
  %1233 = vmatpush1.bf16.msra.mxu0 0
  %1234 = vmatprep.subr.bf16.mxu0 0
  %1235 = vmatpush1.bf16.msra.mxu0 0
  %1236 = vmatprep.subr.bf16.mxu0 0
  %1237 = vmatpush1.bf16.msra.mxu0 0
  %1238 = vmatprep.subr.bf16.mxu0 0
  %1239 = vmatpush1.bf16.msra.mxu0 0
  %1240 = vmatprep.subr.bf16.mxu0 0
  %1241 = vmatpush1.bf16.msra.mxu0 0
  %1242 = vmatprep.subr.bf16.mxu0 0
  %1243 = vmatpush1.bf16.msra.mxu0 0
  %1244 = vmatprep.subr.bf16.mxu0 0
  %1245 = vmatpush1.bf16.msra.mxu0 0
  %1246 = vmatprep.subr.bf16.mxu0 0
  %1247 = vmatpush1.bf16.msra.mxu0 0
  %1248 = vmatprep.mubr.bf16.mxu0 0
  %1249 = vmatmul.mubr.bf16.gmra.mrb[0].mxu0 %v1167
  %v1250 = vpop.f32.mrb[0].mxu0
  %v1251 = vadd.f32 %v1210, %v1250
  %v1252 = vpop.f32.mrb[0].mxu0
  %v1253 = vadd.f32 %v1212, %v1252
  %v1254 = vpop.f32.mrb[0].mxu0
  %v1255 = vpop.f32.mrb[0].mxu0
  %1256 = vdwg.mxu0
  %v1257 = vmul.f32 %v1123, %v821
  %v1258 = vmul.f32 %v1123, %v825
  %v1259 = vadd.f32 %v1251, %v1257
  %v1260 = vadd.f32 %v1253, %v1258
  %v1261 = vadd.f32 %v1259, %v836
  %v1262 = vadd.f32 %v1260, %v840
  %v1263 = vxor.u32 %v1261, 2147483648
  %v1264 = vmul.f32 %v1263, 1.442695
  %v1265 = vpow.pop %v1264
  %v1266 = vadd.f32 %v1265, 1.0
  %v1267 = vrcp.pop %v1266
  %v1268 = vmul.f32 1.0, %v1267
  %v1269 = vtanh.pop %v1262
  %v1270 = vxor.u32 %v1262, 2147483648
  %v1271 = vmul.f32 %v1270, 1.442695
  %v1272 = vpow.pop %v1271
  %v1273 = vadd.f32 %v1272, 1.0
  %v1274 = vrcp.pop %v1273
  %v1275 = vmul.f32 1.0, %v1274
  %v1276 = vmul.f32 %v1268, %v1073
  %v1277 = vmul.f32 %v1268, %v1269
  %1279 = vrot.lane.b32.xlu0 %v1277, 64
  %v1280 = vpop.permute.xlu0 %1279
  %v1282 = vadd.f32 %v1276, %v1280
  %v1283 = vtanh.pop %v1282
  %v1284 = vmul.f32 %v1275, %v1283
  %1285 = vmatprep.subr.bf16.mxu0 %v288
  %1286 = vmatpush1.bf16.msra.mxu0 %v287
  %1287 = vmatprep.subr.bf16.mxu0 %v290
  %1288 = vmatpush1.bf16.msra.mxu0 %v289
  %1289 = vmatprep.subr.bf16.mxu0 %v292
  %1290 = vmatpush1.bf16.msra.mxu0 %v291
  %1291 = vmatprep.subr.bf16.mxu0 %v294
  %1292 = vmatpush1.bf16.msra.mxu0 %v293
  %1293 = vmatprep.subr.bf16.mxu0 %v296
  %1294 = vmatpush1.bf16.msra.mxu0 %v295
  %1295 = vmatprep.subr.bf16.mxu0 %v298
  %1296 = vmatpush1.bf16.msra.mxu0 %v297
  %1297 = vmatprep.subr.bf16.mxu0 %v300
  %1298 = vmatpush1.bf16.msra.mxu0 %v299
  %1299 = vmatprep.subr.bf16.mxu0 %v302
  %1300 = vmatpush1.bf16.msra.mxu0 %v301
  %1301 = vmatprep.subr.bf16.mxu0 %v304
  %1302 = vmatpush1.bf16.msra.mxu0 %v303
  %1303 = vmatprep.subr.bf16.mxu0 %v306
  %1304 = vmatpush1.bf16.msra.mxu0 %v305
  %1305 = vmatprep.subr.bf16.mxu0 %v308
  %1306 = vmatpush1.bf16.msra.mxu0 %v307
  %1307 = vmatprep.subr.bf16.mxu0 %v310
  %1308 = vmatpush1.bf16.msra.mxu0 %v309
  %1309 = vmatprep.subr.bf16.mxu0 %v312
  %1310 = vmatpush1.bf16.msra.mxu0 %v311
  %1311 = vmatprep.subr.bf16.mxu0 %v314
  %1312 = vmatpush1.bf16.msra.mxu0 %v313
  %1313 = vmatprep.subr.bf16.mxu0 %v316
  %1314 = vmatpush1.bf16.msra.mxu0 %v315
  %1315 = vmatprep.subr.bf16.mxu0 %v318
  %1316 = vmatpush1.bf16.msra.mxu0 %v317
  %1317 = vmatprep.mubr.bf16.mxu0 %v1125
  %1318 = vmatmul.mubr.bf16.gmra.mrb[0].mxu0 %v1124
  %v1319 = vpop.f32.mrb[0].mxu0
  %v1320 = vadd.f32 %v151, %v1319
  %v1321 = vpop.f32.mrb[0].mxu0
  %v1322 = vadd.f32 %v152, %v1321
  %v1323 = vpop.f32.mrb[0].mxu0
  %v1324 = vpop.f32.mrb[0].mxu0
  %1325 = vdwg.mxu0
  %v1326 = vmax.f32 %v1320, 0.0
  %v1327 = vmax.f32 %v1322, 0.0
  %v1328 = vmul.f32 %v1326, %v398
  %v1329 = vmul.f32 %v1327, %v402
  %v1330 = vadd.f32 %v1328, %v1329
  %1331 = vadd.xlane.f32.xlu0 %v1330
  %v1332 = vpop.xlane.xlu0 %1331
  %v1333 = vpack.c.bf16 %v1326, %v1326
  %v1334 = vpack.c.bf16 %v1327, %v1327
  %1335 = vmatprep.subr.bf16.mxu0 0
  %1336 = vmatpush1.bf16.msra.mxu0 %v514
  %1337 = vmatprep.subr.bf16.mxu0 0
  %1338 = vmatpush1.bf16.msra.mxu0 %v515
  %1339 = vmatprep.subr.bf16.mxu0 0
  %1340 = vmatpush1.bf16.msra.mxu0 %v516
  %1341 = vmatprep.subr.bf16.mxu0 0
  %1342 = vmatpush1.bf16.msra.mxu0 %v517
  %1343 = vmatprep.subr.bf16.mxu0 0
  %1344 = vmatpush1.bf16.msra.mxu0 %v518
  %1345 = vmatprep.subr.bf16.mxu0 0
  %1346 = vmatpush1.bf16.msra.mxu0 %v519
  %1347 = vmatprep.subr.bf16.mxu0 0
  %1348 = vmatpush1.bf16.msra.mxu0 %v520
  %1349 = vmatprep.subr.bf16.mxu0 0
  %1350 = vmatpush1.bf16.msra.mxu0 %v521
  %1351 = vmatprep.subr.bf16.mxu0 0
  %1352 = vmatpush1.bf16.msra.mxu0 %v522
  %1353 = vmatprep.subr.bf16.mxu0 0
  %1354 = vmatpush1.bf16.msra.mxu0 %v523
  %1355 = vmatprep.subr.bf16.mxu0 0
  %1356 = vmatpush1.bf16.msra.mxu0 %v524
  %1357 = vmatprep.subr.bf16.mxu0 0
  %1358 = vmatpush1.bf16.msra.mxu0 %v525
  %1359 = vmatprep.subr.bf16.mxu0 0
  %1360 = vmatpush1.bf16.msra.mxu0 %v526
  %1361 = vmatprep.subr.bf16.mxu0 0
  %1362 = vmatpush1.bf16.msra.mxu0 %v527
  %1363 = vmatprep.subr.bf16.mxu0 0
  %1364 = vmatpush1.bf16.msra.mxu0 %v528
  %1365 = vmatprep.subr.bf16.mxu0 0
  %1366 = vmatpush1.bf16.msra.mxu0 %v529
  %1367 = vmatprep.mubr.bf16.mxu0 %v1334
  %1368 = vmatmul.mubr.bf16.gmra.mrb[0].mxu0 %v1333
  %v1369 = vpop.f32.mrb[0].mxu0
  %v1370 = vadd.f32 %v448, %v1369
  %v1371 = vpop.f32.mrb[0].mxu0
  %v1372 = vpop.f32.mrb[0].mxu0
  %v1373 = vpop.f32.mrb[0].mxu0
  %1374 = vdwg.mxu0
  %v1375 = vmax.f32 %v1370, 0.0
  %v1376 = vpack.c.bf16 %v1375, %v1375
  %v1377 = vpack.c.bf16 %v1284, %v1284
  %1379 = vrot.lane.b32.xlu0 %v1377, 64
  %v1380 = vpop.permute.xlu0 %1379
  %v1382 = vsel %vm104, %v1380, 0
  %1384 = vmatprep.subr.bf16.mxu0 %v637
  %1385 = vmatpush1.bf16.msra.mxu0 %v636
  %1386 = vmatprep.subr.bf16.mxu0 %v639
  %1387 = vmatpush1.bf16.msra.mxu0 %v638
  %1388 = vmatprep.subr.bf16.mxu0 %v641
  %1389 = vmatpush1.bf16.msra.mxu0 %v640
  %1390 = vmatprep.subr.bf16.mxu0 %v643
  %1391 = vmatpush1.bf16.msra.mxu0 %v642
  %1392 = vmatprep.subr.bf16.mxu0 0
  %1393 = vmatpush1.bf16.msra.mxu0 0
  %1394 = vmatprep.subr.bf16.mxu0 0
  %1395 = vmatpush1.bf16.msra.mxu0 0
  %1396 = vmatprep.subr.bf16.mxu0 0
  %1397 = vmatpush1.bf16.msra.mxu0 0
  %1398 = vmatprep.subr.bf16.mxu0 0
  %1399 = vmatpush1.bf16.msra.mxu0 0
  %1400 = vmatprep.subr.bf16.mxu0 0
  %1401 = vmatpush1.bf16.msra.mxu0 0
  %1402 = vmatprep.subr.bf16.mxu0 0
  %1403 = vmatpush1.bf16.msra.mxu0 0
  %1404 = vmatprep.subr.bf16.mxu0 0
  %1405 = vmatpush1.bf16.msra.mxu0 0
  %1406 = vmatprep.subr.bf16.mxu0 0
  %1407 = vmatpush1.bf16.msra.mxu0 0
  %1408 = vmatprep.subr.bf16.mxu0 0
  %1409 = vmatpush1.bf16.msra.mxu0 0
  %1410 = vmatprep.subr.bf16.mxu0 0
  %1411 = vmatpush1.bf16.msra.mxu0 0
  %1412 = vmatprep.subr.bf16.mxu0 0
  %1413 = vmatpush1.bf16.msra.mxu0 0
  %1414 = vmatprep.subr.bf16.mxu0 0
  %1415 = vmatpush1.bf16.msra.mxu0 0
  %1416 = vmatprep.mubr.bf16.mxu0 0
  %1417 = vmatmul.mubr.bf16.gmra.mrb[0].mxu0 %v1382
  %v1418 = vpop.f32.mrb[0].mxu0
  %v1419 = vadd.f32 0.0, %v1418
  %v1420 = vpop.f32.mrb[0].mxu0
  %v1421 = vadd.f32 0.0, %v1420
  %v1422 = vpop.f32.mrb[0].mxu0
  %v1423 = vpop.f32.mrb[0].mxu0
  %1424 = vdwg.mxu0
  %1425 = vmatprep.subr.bf16.mxu0 %v745
  %1426 = vmatpush1.bf16.msra.mxu0 %v744
  %1427 = vmatprep.subr.bf16.mxu0 %v747
  %1428 = vmatpush1.bf16.msra.mxu0 %v746
  %1429 = vmatprep.subr.bf16.mxu0 %v749
  %1430 = vmatpush1.bf16.msra.mxu0 %v748
  %1431 = vmatprep.subr.bf16.mxu0 %v751
  %1432 = vmatpush1.bf16.msra.mxu0 %v750
  %1433 = vmatprep.subr.bf16.mxu0 %v753
  %1434 = vmatpush1.bf16.msra.mxu0 %v752
  %1435 = vmatprep.subr.bf16.mxu0 %v755
  %1436 = vmatpush1.bf16.msra.mxu0 %v754
  %1437 = vmatprep.subr.bf16.mxu0 %v757
  %1438 = vmatpush1.bf16.msra.mxu0 %v756
  %1439 = vmatprep.subr.bf16.mxu0 %v759
  %1440 = vmatpush1.bf16.msra.mxu0 %v758
  %1441 = vmatprep.subr.bf16.mxu0 0
  %1442 = vmatpush1.bf16.msra.mxu0 0
  %1443 = vmatprep.subr.bf16.mxu0 0
  %1444 = vmatpush1.bf16.msra.mxu0 0
  %1445 = vmatprep.subr.bf16.mxu0 0
  %1446 = vmatpush1.bf16.msra.mxu0 0
  %1447 = vmatprep.subr.bf16.mxu0 0
  %1448 = vmatpush1.bf16.msra.mxu0 0
  %1449 = vmatprep.subr.bf16.mxu0 0
  %1450 = vmatpush1.bf16.msra.mxu0 0
  %1451 = vmatprep.subr.bf16.mxu0 0
  %1452 = vmatpush1.bf16.msra.mxu0 0
  %1453 = vmatprep.subr.bf16.mxu0 0
  %1454 = vmatpush1.bf16.msra.mxu0 0
  %1455 = vmatprep.subr.bf16.mxu0 0
  %1456 = vmatpush1.bf16.msra.mxu0 0
  %1457 = vmatprep.mubr.bf16.mxu0 0
  %1458 = vmatmul.mubr.bf16.gmra.mrb[0].mxu0 %v1376
  %v1459 = vpop.f32.mrb[0].mxu0
  %v1460 = vadd.f32 %v1419, %v1459
  %v1461 = vpop.f32.mrb[0].mxu0
  %v1462 = vadd.f32 %v1421, %v1461
  %v1463 = vpop.f32.mrb[0].mxu0
  %v1464 = vpop.f32.mrb[0].mxu0
  %1465 = vdwg.mxu0
  %v1466 = vmul.f32 %v1332, %v821
  %v1467 = vmul.f32 %v1332, %v825
  %v1468 = vadd.f32 %v1460, %v1466
  %v1469 = vadd.f32 %v1462, %v1467
  %v1470 = vadd.f32 %v1468, %v836
  %v1471 = vadd.f32 %v1469, %v840
  %v1472 = vxor.u32 %v1470, 2147483648
  %v1473 = vmul.f32 %v1472, 1.442695
  %v1474 = vpow.pop %v1473
  %v1475 = vadd.f32 %v1474, 1.0
  %v1476 = vrcp.pop %v1475
  %v1477 = vmul.f32 1.0, %v1476
  %v1478 = vtanh.pop %v1471
  %v1479 = vxor.u32 %v1471, 2147483648
  %v1480 = vmul.f32 %v1479, 1.442695
  %v1481 = vpow.pop %v1480
  %v1482 = vadd.f32 %v1481, 1.0
  %v1483 = vrcp.pop %v1482
  %v1484 = vmul.f32 1.0, %v1483
  %v1485 = vmul.f32 %v1477, %v1282
  %v1486 = vmul.f32 %v1477, %v1478
  %1488 = vrot.lane.b32.xlu0 %v1486, 64
  %v1489 = vpop.permute.xlu0 %1488
  %v1491 = vadd.f32 %v1485, %v1489
  %v1492 = vtanh.pop %v1491
  %v1493 = vmul.f32 %v1484, %v1492
  %1494 = vmatprep.subr.bf16.mxu0 %v288
  %1495 = vmatpush1.bf16.msra.mxu0 %v287
  %1496 = vmatprep.subr.bf16.mxu0 %v290
  %1497 = vmatpush1.bf16.msra.mxu0 %v289
  %1498 = vmatprep.subr.bf16.mxu0 %v292
  %1499 = vmatpush1.bf16.msra.mxu0 %v291
  %1500 = vmatprep.subr.bf16.mxu0 %v294
  %1501 = vmatpush1.bf16.msra.mxu0 %v293
  %1502 = vmatprep.subr.bf16.mxu0 %v296
  %1503 = vmatpush1.bf16.msra.mxu0 %v295
  %1504 = vmatprep.subr.bf16.mxu0 %v298
  %1505 = vmatpush1.bf16.msra.mxu0 %v297
  %1506 = vmatprep.subr.bf16.mxu0 %v300
  %1507 = vmatpush1.bf16.msra.mxu0 %v299
  %1508 = vmatprep.subr.bf16.mxu0 %v302
  %1509 = vmatpush1.bf16.msra.mxu0 %v301
  %1510 = vmatprep.subr.bf16.mxu0 %v304
  %1511 = vmatpush1.bf16.msra.mxu0 %v303
  %1512 = vmatprep.subr.bf16.mxu0 %v306
  %1513 = vmatpush1.bf16.msra.mxu0 %v305
  %1514 = vmatprep.subr.bf16.mxu0 %v308
  %1515 = vmatpush1.bf16.msra.mxu0 %v307
  %1516 = vmatprep.subr.bf16.mxu0 %v310
  %1517 = vmatpush1.bf16.msra.mxu0 %v309
  %1518 = vmatprep.subr.bf16.mxu0 %v312
  %1519 = vmatpush1.bf16.msra.mxu0 %v311
  %1520 = vmatprep.subr.bf16.mxu0 %v314
  %1521 = vmatpush1.bf16.msra.mxu0 %v313
  %1522 = vmatprep.subr.bf16.mxu0 %v316
  %1523 = vmatpush1.bf16.msra.mxu0 %v315
  %1524 = vmatprep.subr.bf16.mxu0 %v318
  %1525 = vmatpush1.bf16.msra.mxu0 %v317
  %1526 = vmatprep.mubr.bf16.mxu0 %v1334
  %1527 = vmatmul.mubr.bf16.gmra.mrb[0].mxu0 %v1333
  %v1528 = vpop.f32.mrb[0].mxu0
  %v1529 = vadd.f32 %v151, %v1528
  %v1530 = vpop.f32.mrb[0].mxu0
  %v1531 = vadd.f32 %v152, %v1530
  %v1532 = vpop.f32.mrb[0].mxu0
  %v1533 = vpop.f32.mrb[0].mxu0
  %1534 = vdwg.mxu0
  %v1535 = vmax.f32 %v1529, 0.0
  %v1536 = vmax.f32 %v1531, 0.0
  %v1537 = vmul.f32 %v1535, %v398
  %v1538 = vmul.f32 %v1536, %v402
  %v1539 = vadd.f32 %v1537, %v1538
  %1540 = vadd.xlane.f32.xlu0 %v1539
  %v1541 = vpop.xlane.xlu0 %1540
  %v1542 = vpack.c.bf16 %v1535, %v1535
  %v1543 = vpack.c.bf16 %v1536, %v1536
  %1544 = vmatprep.subr.bf16.mxu0 0
  %1545 = vmatpush1.bf16.msra.mxu0 %v514
  %1546 = vmatprep.subr.bf16.mxu0 0
  %1547 = vmatpush1.bf16.msra.mxu0 %v515
  %1548 = vmatprep.subr.bf16.mxu0 0
  %1549 = vmatpush1.bf16.msra.mxu0 %v516
  %1550 = vmatprep.subr.bf16.mxu0 0
  %1551 = vmatpush1.bf16.msra.mxu0 %v517
  %1552 = vmatprep.subr.bf16.mxu0 0
  %1553 = vmatpush1.bf16.msra.mxu0 %v518
  %1554 = vmatprep.subr.bf16.mxu0 0
  %1555 = vmatpush1.bf16.msra.mxu0 %v519
  %1556 = vmatprep.subr.bf16.mxu0 0
  %1557 = vmatpush1.bf16.msra.mxu0 %v520
  %1558 = vmatprep.subr.bf16.mxu0 0
  %1559 = vmatpush1.bf16.msra.mxu0 %v521
  %1560 = vmatprep.subr.bf16.mxu0 0
  %1561 = vmatpush1.bf16.msra.mxu0 %v522
  %1562 = vmatprep.subr.bf16.mxu0 0
  %1563 = vmatpush1.bf16.msra.mxu0 %v523
  %1564 = vmatprep.subr.bf16.mxu0 0
  %1565 = vmatpush1.bf16.msra.mxu0 %v524
  %1566 = vmatprep.subr.bf16.mxu0 0
  %1567 = vmatpush1.bf16.msra.mxu0 %v525
  %1568 = vmatprep.subr.bf16.mxu0 0
  %1569 = vmatpush1.bf16.msra.mxu0 %v526
  %1570 = vmatprep.subr.bf16.mxu0 0
  %1571 = vmatpush1.bf16.msra.mxu0 %v527
  %1572 = vmatprep.subr.bf16.mxu0 0
  %1573 = vmatpush1.bf16.msra.mxu0 %v528
  %1574 = vmatprep.subr.bf16.mxu0 0
  %1575 = vmatpush1.bf16.msra.mxu0 %v529
  %1576 = vmatprep.mubr.bf16.mxu0 %v1543
  %1577 = vmatmul.mubr.bf16.gmra.mrb[0].mxu0 %v1542
  %v1578 = vpop.f32.mrb[0].mxu0
  %v1579 = vadd.f32 %v448, %v1578
  %v1580 = vpop.f32.mrb[0].mxu0
  %v1581 = vpop.f32.mrb[0].mxu0
  %v1582 = vpop.f32.mrb[0].mxu0
  %1583 = vdwg.mxu0
  %v1584 = vmax.f32 %v1579, 0.0
  %v1585 = vpack.c.bf16 %v1584, %v1584
  %v1586 = vpack.c.bf16 %v1493, %v1493
  %1588 = vrot.lane.b32.xlu0 %v1586, 64
  %v1589 = vpop.permute.xlu0 %1588
  %v1591 = vsel %vm104, %v1589, 0
  %1593 = vmatprep.subr.bf16.mxu0 %v637
  %1594 = vmatpush1.bf16.msra.mxu0 %v636
  %1595 = vmatprep.subr.bf16.mxu0 %v639
  %1596 = vmatpush1.bf16.msra.mxu0 %v638
  %1597 = vmatprep.subr.bf16.mxu0 %v641
  %1598 = vmatpush1.bf16.msra.mxu0 %v640
  %1599 = vmatprep.subr.bf16.mxu0 %v643
  %1600 = vmatpush1.bf16.msra.mxu0 %v642
  %1601 = vmatprep.subr.bf16.mxu0 0
  %1602 = vmatpush1.bf16.msra.mxu0 0
  %1603 = vmatprep.subr.bf16.mxu0 0
  %1604 = vmatpush1.bf16.msra.mxu0 0
  %1605 = vmatprep.subr.bf16.mxu0 0
  %1606 = vmatpush1.bf16.msra.mxu0 0
  %1607 = vmatprep.subr.bf16.mxu0 0
  %1608 = vmatpush1.bf16.msra.mxu0 0
  %1609 = vmatprep.subr.bf16.mxu0 0
  %1610 = vmatpush1.bf16.msra.mxu0 0
  %1611 = vmatprep.subr.bf16.mxu0 0
  %1612 = vmatpush1.bf16.msra.mxu0 0
  %1613 = vmatprep.subr.bf16.mxu0 0
  %1614 = vmatpush1.bf16.msra.mxu0 0
  %1615 = vmatprep.subr.bf16.mxu0 0
  %1616 = vmatpush1.bf16.msra.mxu0 0
  %1617 = vmatprep.subr.bf16.mxu0 0
  %1618 = vmatpush1.bf16.msra.mxu0 0
  %1619 = vmatprep.subr.bf16.mxu0 0
  %1620 = vmatpush1.bf16.msra.mxu0 0
  %1621 = vmatprep.subr.bf16.mxu0 0
  %1622 = vmatpush1.bf16.msra.mxu0 0
  %1623 = vmatprep.subr.bf16.mxu0 0
  %1624 = vmatpush1.bf16.msra.mxu0 0
  %1625 = vmatprep.mubr.bf16.mxu0 0
  %1626 = vmatmul.mubr.bf16.gmra.mrb[0].mxu0 %v1591
  %v1627 = vpop.f32.mrb[0].mxu0
  %v1628 = vadd.f32 0.0, %v1627
  %v1629 = vpop.f32.mrb[0].mxu0
  %v1630 = vadd.f32 0.0, %v1629
  %v1631 = vpop.f32.mrb[0].mxu0
  %v1632 = vpop.f32.mrb[0].mxu0
  %1633 = vdwg.mxu0
  %1634 = vmatprep.subr.bf16.mxu0 %v745
  %1635 = vmatpush1.bf16.msra.mxu0 %v744
  %1636 = vmatprep.subr.bf16.mxu0 %v747
  %1637 = vmatpush1.bf16.msra.mxu0 %v746
  %1638 = vmatprep.subr.bf16.mxu0 %v749
  %1639 = vmatpush1.bf16.msra.mxu0 %v748
  %1640 = vmatprep.subr.bf16.mxu0 %v751
  %1641 = vmatpush1.bf16.msra.mxu0 %v750
  %1642 = vmatprep.subr.bf16.mxu0 %v753
  %1643 = vmatpush1.bf16.msra.mxu0 %v752
  %1644 = vmatprep.subr.bf16.mxu0 %v755
  %1645 = vmatpush1.bf16.msra.mxu0 %v754
  %1646 = vmatprep.subr.bf16.mxu0 %v757
  %1647 = vmatpush1.bf16.msra.mxu0 %v756
  %1648 = vmatprep.subr.bf16.mxu0 %v759
  %1649 = vmatpush1.bf16.msra.mxu0 %v758
  %1650 = vmatprep.subr.bf16.mxu0 0
  %1651 = vmatpush1.bf16.msra.mxu0 0
  %1652 = vmatprep.subr.bf16.mxu0 0
  %1653 = vmatpush1.bf16.msra.mxu0 0
  %1654 = vmatprep.subr.bf16.mxu0 0
  %1655 = vmatpush1.bf16.msra.mxu0 0
  %1656 = vmatprep.subr.bf16.mxu0 0
  %1657 = vmatpush1.bf16.msra.mxu0 0
  %1658 = vmatprep.subr.bf16.mxu0 0
  %1659 = vmatpush1.bf16.msra.mxu0 0
  %1660 = vmatprep.subr.bf16.mxu0 0
  %1661 = vmatpush1.bf16.msra.mxu0 0
  %1662 = vmatprep.subr.bf16.mxu0 0
  %1663 = vmatpush1.bf16.msra.mxu0 0
  %1664 = vmatprep.subr.bf16.mxu0 0
  %1665 = vmatpush1.bf16.msra.mxu0 0
  %1666 = vmatprep.mubr.bf16.mxu0 0
  %1667 = vmatmul.mubr.bf16.gmra.mrb[0].mxu0 %v1585
  %v1668 = vpop.f32.mrb[0].mxu0
  %v1669 = vadd.f32 %v1628, %v1668
  %v1670 = vpop.f32.mrb[0].mxu0
  %v1671 = vadd.f32 %v1630, %v1670
  %v1672 = vpop.f32.mrb[0].mxu0
  %v1673 = vpop.f32.mrb[0].mxu0
  %1674 = vdwg.mxu0
  %v1675 = vmul.f32 %v1541, %v821
  %v1676 = vmul.f32 %v1541, %v825
  %v1677 = vadd.f32 %v1669, %v1675
  %v1678 = vadd.f32 %v1671, %v1676
  %v1679 = vadd.f32 %v1677, %v836
  %v1680 = vadd.f32 %v1678, %v840
  %v1681 = vxor.u32 %v1679, 2147483648
  %v1682 = vmul.f32 %v1681, 1.442695
  %v1683 = vpow.pop %v1682
  %v1684 = vadd.f32 %v1683, 1.0
  %v1685 = vrcp.pop %v1684
  %v1686 = vmul.f32 1.0, %v1685
  %v1687 = vtanh.pop %v1680
  %v1688 = vxor.u32 %v1680, 2147483648
  %v1689 = vmul.f32 %v1688, 1.442695
  %v1690 = vpow.pop %v1689
  %v1691 = vadd.f32 %v1690, 1.0
  %v1692 = vrcp.pop %v1691
  %v1693 = vmul.f32 1.0, %v1692
  %v1694 = vmul.f32 %v1686, %v1491
  %v1695 = vmul.f32 %v1686, %v1687
  %1697 = vrot.lane.b32.xlu0 %v1695, 64
  %v1698 = vpop.permute.xlu0 %1697
  %v1700 = vadd.f32 %v1694, %v1698
  %v1701 = vtanh.pop %v1700
  %v1702 = vmul.f32 %v1693, %v1701
  %1704 = vrot.lane.b32.xlu0 %v1702, 64
  %v1705 = vpop.permute.xlu0 %1704
  %1707 = vst.msk [vmem:[%s12] sm:$0xff] %vm104, %v1705
  // Predicated region
  $region50: #{latent_space_model_based_forward.1} parent=0 // pred_check
    _
  $region51: #{latent_space_model_based_forward.1} parent=0 // pred_check_branch
    %1709 = sbr.rel (0) target = $region53
  $region52: #{latent_space_model_based_forward.1} parent=0 // pred_region
    _
  $region53: #{latent_space_model_based_forward.1} parent=0 // pred_fallthru
    _
  // Predicated region
  $region54: #{latent_space_model_based_forward.1} parent=0 // pred_check
    _
  $region55: #{latent_space_model_based_forward.1} parent=0 // pred_check_branch
    %1711 = sbr.rel (0) target = $region57
  $region56: #{latent_space_model_based_forward.1} parent=0 // pred_region
    _
  $region57: #{latent_space_model_based_forward.1} parent=0 // pred_fallthru
    _

</llo_original>
